<compile_context>
chip_gen: v7x
topology: tpu7x:2x2x1
jax: 0.10.0
libtpu: 0.0.40
codegen_flags: <defaults>
</compile_context>

<pallas_src>
import functools

import jax
import jax.numpy as jnp
from jax.experimental import pallas as pl
from jax.experimental.pallas import tpu as pltpu


def _resnet_block_kernel(eps, skip_scale, has_shortcut,
                         x_ref,
                         g1_ref, b1_ref, m1_ref, mt1_ref, w1_ref, c1b_ref,
                         g2_ref, b2_ref, m2_ref, mt2_ref, w2_ref, c2b_ref,
                         *rest):
    if has_shortcut:
        ws_ref, bs_ref, o_ref = rest
    else:
        (o_ref,) = rest

    x = x_ref[0]                          # (Cin, L) f32, NCL layout (L on lanes)

    def group_norm(h, mt_ref, m_ref, gamma_ref, beta_ref):
        # h: (C, L) f32.  Group stats via tiny f32 matmuls with the
        # channel<->group membership matrices (no in-kernel reshape/transpose).
        c, l = h.shape
        g = m_ref.shape[1]
        n = l * (c // g)                                   # elements per group
        s1 = jnp.sum(h, axis=1, keepdims=True)             # (C, 1)
        s2 = jnp.sum(h * h, axis=1, keepdims=True)         # (C, 1)
        s12 = jnp.concatenate([s1, s2], axis=1)            # (C, 2): one dot, not two
        gstats = jnp.dot(mt_ref[...], s12,
                         preferred_element_type=jnp.float32) / n   # (G, 2)
        mean_g = gstats[:, 0:1]
        var_g = gstats[:, 1:2] - mean_g * mean_g           # biased variance
        inv_g = jax.lax.rsqrt(var_g + eps)
        # broadcast group stats back to channels (one-hot membership matmul)
        cstats = jnp.dot(m_ref[...],
                         jnp.concatenate([mean_g, inv_g], axis=1),
                         preferred_element_type=jnp.float32)        # (C, 2)
        return (h - cstats[:, 0:1]) * cstats[:, 1:2] * gamma_ref[...] + beta_ref[...]

    def silu(h):
        return h * jax.nn.sigmoid(h)

    def conv3(h, w_ref, bias_ref):
        # h: (Cin_h, L) f32; w_ref: (3, Cout_h, Cin_h) bf16; bias: (Cout_h, 1) f32
        # y[:, l] = b + W0 @ h[:, l-1] + W1 @ h[:, l] + W2 @ h[:, l+1], zero pad.
        l = h.shape[1]
        lidx = jax.lax.broadcasted_iota(jnp.int32, (1, l), 1)       # (1, L)
        # roll(shift=1):   out[:, t] = h[:, t-1]  (zero the wrapped column t==0)
        h_m1 = jnp.where(lidx == 0, 0.0,
                         pltpu.roll(h, shift=1, axis=1)).astype(jnp.bfloat16)
        # roll(shift=l-1): out[:, t] = h[:, t+1]  (non-negative shift; zero t==L-1)
        h_p1 = jnp.where(lidx == l - 1, 0.0,
                         pltpu.roll(h, shift=l - 1, axis=1)).astype(jnp.bfloat16)
        hb = h.astype(jnp.bfloat16)
        y = bias_ref[...]
        y = y + jnp.dot(w_ref[0], h_m1, preferred_element_type=jnp.float32)
        y = y + jnp.dot(w_ref[1], hb, preferred_element_type=jnp.float32)
        y = y + jnp.dot(w_ref[2], h_p1, preferred_element_type=jnp.float32)
        return y

    h = group_norm(x, mt1_ref, m1_ref, g1_ref, b1_ref)
    h = silu(h)
    h = conv3(h, w1_ref, c1b_ref)
    h = group_norm(h, mt2_ref, m2_ref, g2_ref, b2_ref)
    h = silu(h)
    h = conv3(h, w2_ref, c2b_ref)

    if has_shortcut:
        # 1x1 conv shortcut: (Cout, Cin) @ (Cin, L) + bias, bf16 on the MXU.
        sc = jnp.dot(ws_ref[...], x.astype(jnp.bfloat16),
                     preferred_element_type=jnp.float32) + bs_ref[...]
    else:
        sc = x                            # identity: no matmul, no identity weight

    o_ref[0] = ((h + sc) * skip_scale).astype(o_ref.dtype)


def resnet_block_pallas(x_ncl, params, *, groups, eps=1e-5, skip_scale=1.0):
    """x_ncl: (B, Cin, L) float32, PyTorch NCL layout (kernel works in NCL)."""
    B, Cin, L = x_ncl.shape
    Cout = params["w1"].shape[1]
    has_shortcut = "ws" in params

    def membership(c):                                     # (C, G) one-hot
        cg = c // groups
        return (jnp.arange(c)[:, None] // cg
                == jnp.arange(groups)[None, :]).astype(jnp.float32)

    def membership_t(c):                                   # (G, C) one-hot
        cg = c // groups
        return (jnp.arange(groups)[:, None]
                == jnp.arange(c)[None, :] // cg).astype(jnp.float32)

    m1, mt1 = membership(Cin), membership_t(Cin)
    m2, mt2 = membership(Cout), membership_t(Cout)

    kernel = functools.partial(_resnet_block_kernel, eps, skip_scale, has_shortcut)

    def const_spec(shape):
        return pl.BlockSpec(shape, lambda b, _s=shape: (0,) * len(_s))

    in_specs = [
        pl.BlockSpec((1, Cin, L), lambda b: (b, 0, 0)),    # x
        const_spec((Cin, 1)),            # gamma1
        const_spec((Cin, 1)),            # beta1
        const_spec((Cin, groups)),       # M1  (channel -> group one-hot)
        const_spec((groups, Cin)),       # M1^T (pre-transposed on host)
        const_spec((3, Cout, Cin)),      # W1 (bf16)
        const_spec((Cout, 1)),           # conv1 bias
        const_spec((Cout, 1)),           # gamma2
        const_spec((Cout, 1)),           # beta2
        const_spec((Cout, groups)),      # M2
        const_spec((groups, Cout)),      # M2^T
        const_spec((3, Cout, Cout)),     # W2 (bf16)
        const_spec((Cout, 1)),           # conv2 bias
    ]
    inputs = [
        x_ncl,
        params["gamma1"][:, None], params["beta1"][:, None], m1, mt1,
        params["w1"], params["b1"][:, None],
        params["gamma2"][:, None], params["beta2"][:, None], m2, mt2,
        params["w2"], params["b2"][:, None],
    ]
    if has_shortcut:
        in_specs += [const_spec((Cout, Cin)), const_spec((Cout, 1))]
        inputs += [params["ws"], params["bs"][:, None]]

    out = pl.pallas_call(
        kernel,
        out_shape=jax.ShapeDtypeStruct((B, Cout, L), jnp.float32),
        grid_spec=pltpu.PrefetchScalarGridSpec(
            num_scalar_prefetch=0,
            grid=(B,),
            in_specs=in_specs,
            out_specs=pl.BlockSpec((1, Cout, L), lambda b: (b, 0, 0)),
        ),
        compiler_params=pltpu.CompilerParams(
            dimension_semantics=("parallel",)),   # shard batch across TCs on v7x
    )(*inputs)
    return out


# ---------------------------------------------------------------------------
# pure-JAX reference (mirrors the PyTorch forward in NCL layout, f32)
# ---------------------------------------------------------------------------
def _ref_group_norm(x, gamma, beta, groups, eps):
    B, C, L = x.shape
    xg = x.reshape(B, groups, C // groups, L)
    mean = xg.mean(axis=(2, 3), keepdims=True)
    var = xg.var(axis=(2, 3), keepdims=True)
    xn = ((xg - mean) / jnp.sqrt(var + eps)).reshape(B, C, L)
    return xn * gamma[None, :, None] + beta[None, :, None]


def _ref_conv1d(x, w_oik, b, pad):
    y = jax.lax.conv_general_dilated(
        x, w_oik, window_strides=(1,), padding=[(pad, pad)],
        dimension_numbers=("NCH", "OIH", "NCH"))
    return y + b[None, :, None]


def resnet_block_ref(x, p_t, *, groups, eps=1e-5, skip_scale=1.0):
    res = x
    h = _ref_group_norm(x, p_t["gamma1"], p_t["beta1"], groups, eps)
    h = jax.nn.silu(h)
    h = _ref_conv1d(h, p_t["w1_oik"], p_t["b1"], 1)
    h = _ref_group_norm(h, p_t["gamma2"], p_t["beta2"], groups, eps)
    h = jax.nn.silu(h)
    h = _ref_conv1d(h, p_t["w2_oik"], p_t["b2"], 1)
    if "ws_oik" in p_t:
        sc = _ref_conv1d(res, p_t["ws_oik"], p_t["bs"], 0)
    else:
        sc = res
    return (h + sc) * skip_scale


def _make_params(key, cin, cout, has_shortcut):
    ks = jax.random.split(key, 10)
    w1_oik = 0.1 * jax.random.normal(ks[0], (cout, cin, 3), jnp.float32)
    b1 = 0.1 * jax.random.normal(ks[1], (cout,), jnp.float32)
    w2_oik = 0.1 * jax.random.normal(ks[2], (cout, cout, 3), jnp.float32)
    b2 = 0.1 * jax.random.normal(ks[3], (cout,), jnp.float32)
    gamma1 = 1.0 + 0.05 * jax.random.normal(ks[4], (cin,), jnp.float32)
    beta1 = 0.05 * jax.random.normal(ks[5], (cin,), jnp.float32)
    gamma2 = 1.0 + 0.05 * jax.random.normal(ks[6], (cout,), jnp.float32)
    beta2 = 0.05 * jax.random.normal(ks[7], (cout,), jnp.float32)

    p_kernel = {
        "gamma1": gamma1, "beta1": beta1,
        "w1": jnp.transpose(w1_oik, (2, 0, 1)).astype(jnp.bfloat16),  # (3,Cout,Cin)
        "b1": b1,
        "gamma2": gamma2, "beta2": beta2,
        "w2": jnp.transpose(w2_oik, (2, 0, 1)).astype(jnp.bfloat16),  # (3,Cout,Cout)
        "b2": b2,
    }
    p_torch = {
        "gamma1": gamma1, "beta1": beta1, "w1_oik": w1_oik, "b1": b1,
        "gamma2": gamma2, "beta2": beta2, "w2_oik": w2_oik, "b2": b2,
    }
    if has_shortcut:
        ws_oik = 0.1 * jax.random.normal(ks[8], (cout, cin, 1), jnp.float32)
        bs = 0.1 * jax.random.normal(ks[9], (cout,), jnp.float32)
        p_kernel["ws"] = ws_oik[:, :, 0].astype(jnp.bfloat16)         # (Cout, Cin)
        p_kernel["bs"] = bs
        p_torch["ws_oik"] = ws_oik
        p_torch["bs"] = bs
    return p_kernel, p_torch


if __name__ == "__main__":
    eps = 1e-5
    skip_scale = 0.70710678

    root = jax.random.PRNGKey(0)
    k_p1, k_p2, k_x1, k_x2 = jax.random.split(root, 4)

    # --- config 1: Cin != Cout (1x1-conv shortcut path exercised) -----------
    B, Cin, Cout, L, G = 2, 8, 16, 16, 4
    p_k, p_t = _make_params(k_p1, Cin, Cout, has_shortcut=True)
    x = jax.random.normal(k_x1, (B, Cin, L), jnp.float32)

    y_kernel = jax.block_until_ready(
        resnet_block_pallas(x, p_k, groups=G, eps=eps, skip_scale=skip_scale))
    y_ref = resnet_block_ref(x, p_t, groups=G, eps=eps, skip_scale=skip_scale)
    assert y_kernel.shape == (B, Cout, L)
    # bf16 MXU matmuls vs f32 reference -> looser tolerance than pure-f32.
    err1 = float(jnp.max(jnp.abs(y_kernel - y_ref)))
    assert jnp.allclose(y_kernel, y_ref, atol=5e-2, rtol=5e-2), err1

    # --- config 2: Cin == Cout (identity shortcut, no shortcut matmul) ------
    B2, C2, L2, G2 = 2, 16, 16, 4
    p_k2, p_t2 = _make_params(k_p2, C2, C2, has_shortcut=False)
    x2 = jax.random.normal(k_x2, (B2, C2, L2), jnp.float32)

    y2_kernel = jax.block_until_ready(
        resnet_block_pallas(x2, p_k2, groups=G2, eps=eps, skip_scale=1.0))
    y2_ref = resnet_block_ref(x2, p_t2, groups=G2, eps=eps, skip_scale=1.0)
    assert y2_kernel.shape == (B2, C2, L2)
    err2 = float(jnp.max(jnp.abs(y2_kernel - y2_ref)))
    assert jnp.allclose(y2_kernel, y2_ref, atol=5e-2, rtol=5e-2), err2

    print("KERNEL_OK")
</pallas_src>

<mosaic_0001>
module attributes {stable_mosaic.version = 11 : i64} {
  func.func @_resnet_block_kernel(%arg0: i32, %arg1: memref<1x8x16xf32, #tpu.memory_space<vmem>>, %arg2: memref<8x1xf32, #tpu.memory_space<vmem>>, %arg3: memref<8x1xf32, #tpu.memory_space<vmem>>, %arg4: memref<8x4xf32, #tpu.memory_space<vmem>>, %arg5: memref<4x8xf32, #tpu.memory_space<vmem>>, %arg6: memref<3x16x8xbf16, #tpu.memory_space<vmem>>, %arg7: memref<16x1xf32, #tpu.memory_space<vmem>>, %arg8: memref<16x1xf32, #tpu.memory_space<vmem>>, %arg9: memref<16x1xf32, #tpu.memory_space<vmem>>, %arg10: memref<16x4xf32, #tpu.memory_space<vmem>>, %arg11: memref<4x16xf32, #tpu.memory_space<vmem>>, %arg12: memref<3x16x16xbf16, #tpu.memory_space<vmem>>, %arg13: memref<16x1xf32, #tpu.memory_space<vmem>>, %arg14: memref<16x8xbf16, #tpu.memory_space<vmem>>, %arg15: memref<16x1xf32, #tpu.memory_space<vmem>>, %arg16: memref<1x16x16xf32, #tpu.memory_space<vmem>>) attributes {dimension_semantics = [#tpu.dimension_semantics<parallel>], iteration_bounds = array<i64: 2>, scalar_prefetch = 0 : i64, scratch_operands = 0 : i64, tpu.core_type = #tpu.core_type<tc>, window_params = [{transform_indices = @transform_0, window_bounds = array<i64: 1, 8, 16>}, {pipeline_mode = #tpu.pipeline_mode<synchronous>, transform_indices = @transform_1, window_bounds = array<i64: 8, 1>}, {pipeline_mode = #tpu.pipeline_mode<synchronous>, transform_indices = @transform_2, window_bounds = array<i64: 8, 1>}, {pipeline_mode = #tpu.pipeline_mode<synchronous>, transform_indices = @transform_3, window_bounds = array<i64: 8, 4>}, {pipeline_mode = #tpu.pipeline_mode<synchronous>, transform_indices = @transform_4, window_bounds = array<i64: 4, 8>}, {pipeline_mode = #tpu.pipeline_mode<synchronous>, transform_indices = @transform_5, window_bounds = array<i64: 3, 16, 8>}, {pipeline_mode = #tpu.pipeline_mode<synchronous>, transform_indices = @transform_6, window_bounds = array<i64: 16, 1>}, {pipeline_mode = #tpu.pipeline_mode<synchronous>, transform_indices = @transform_7, window_bounds = array<i64: 16, 1>}, {pipeline_mode = #tpu.pipeline_mode<synchronous>, transform_indices = @transform_8, window_bounds = array<i64: 16, 1>}, {pipeline_mode = #tpu.pipeline_mode<synchronous>, transform_indices = @transform_9, window_bounds = array<i64: 16, 4>}, {pipeline_mode = #tpu.pipeline_mode<synchronous>, transform_indices = @transform_10, window_bounds = array<i64: 4, 16>}, {pipeline_mode = #tpu.pipeline_mode<synchronous>, transform_indices = @transform_11, window_bounds = array<i64: 3, 16, 16>}, {pipeline_mode = #tpu.pipeline_mode<synchronous>, transform_indices = @transform_12, window_bounds = array<i64: 16, 1>}, {pipeline_mode = #tpu.pipeline_mode<synchronous>, transform_indices = @transform_13, window_bounds = array<i64: 16, 8>}, {pipeline_mode = #tpu.pipeline_mode<synchronous>, transform_indices = @transform_14, window_bounds = array<i64: 16, 1>}, {transform_indices = @transform_15, window_bounds = array<i64: 1, 16, 16>}]} {
    %c0 = arith.constant 0 : index
    %c0_0 = arith.constant 0 : index
    %c0_1 = arith.constant 0 : index
    %0 = vector.load %arg1[%c0, %c0_0, %c0_1] : memref<1x8x16xf32, #tpu.memory_space<vmem>>, vector<1x8x16xf32>
    %1 = vector.shape_cast %0 : vector<1x8x16xf32> to vector<8x16xf32>
    %cst = arith.constant dense<0.000000e+00> : vector<8xf32>
    %2 = vector.multi_reduction <add>, %1, %cst [1] : vector<8x16xf32> to vector<8xf32>
    %3 = vector.shape_cast %2 : vector<8xf32> to vector<8x1xf32>
    %4 = arith.mulf %1, %1 : vector<8x16xf32>
    %cst_2 = arith.constant dense<0.000000e+00> : vector<8xf32>
    %5 = vector.multi_reduction <add>, %4, %cst_2 [1] : vector<8x16xf32> to vector<8xf32>
    %6 = vector.shape_cast %5 : vector<8xf32> to vector<8x1xf32>
    %7 = tpu.concatenate %3, %6 in 1 : vector<8x1xf32>, vector<8x1xf32> -> vector<8x2xf32>
    %c0_3 = arith.constant 0 : index
    %c0_4 = arith.constant 0 : index
    %8 = vector.load %arg5[%c0_3, %c0_4] : memref<4x8xf32, #tpu.memory_space<vmem>>, vector<4x8xf32>
    %cst_5 = arith.constant dense<0.000000e+00> : vector<4x2xf32>
    %9 = tpu.matmul %8, %7, %cst_5 {dimension_numbers = #tpu.dot_dimension_numbers<[1], [0], [0], [1], [0, 0, 1, 1], [], []>} : vector<4x8xf32>, vector<8x2xf32>, vector<4x2xf32> -> vector<4x2xf32>
    %cst_6 = arith.constant 3.200000e+01 : f32
    %10 = vector.broadcast %cst_6 : f32 to vector<4x2xf32>
    %11 = arith.divf %9, %10 : vector<4x2xf32>
    %12 = vector.extract_strided_slice %11 {offsets = [0, 0], sizes = [4, 1], strides = [1, 1]} : vector<4x2xf32> to vector<4x1xf32>
    %13 = vector.extract_strided_slice %11 {offsets = [0, 1], sizes = [4, 1], strides = [1, 1]} : vector<4x2xf32> to vector<4x1xf32>
    %14 = arith.mulf %12, %12 : vector<4x1xf32>
    %15 = arith.subf %13, %14 : vector<4x1xf32>
    %cst_7 = arith.constant 9.99999974E-6 : f32
    %16 = vector.broadcast %cst_7 : f32 to vector<4x1xf32>
    %17 = arith.addf %15, %16 : vector<4x1xf32>
    %18 = math.rsqrt %17 : vector<4x1xf32>
    %c0_8 = arith.constant 0 : index
    %c0_9 = arith.constant 0 : index
    %19 = vector.load %arg4[%c0_8, %c0_9] : memref<8x4xf32, #tpu.memory_space<vmem>>, vector<8x4xf32>
    %20 = tpu.concatenate %12, %18 in 1 : vector<4x1xf32>, vector<4x1xf32> -> vector<4x2xf32>
    %cst_10 = arith.constant dense<0.000000e+00> : vector<8x2xf32>
    %21 = tpu.matmul %19, %20, %cst_10 {dimension_numbers = #tpu.dot_dimension_numbers<[1], [0], [0], [1], [0, 0, 1, 1], [], []>} : vector<8x4xf32>, vector<4x2xf32>, vector<8x2xf32> -> vector<8x2xf32>
    %22 = vector.extract_strided_slice %21 {offsets = [0, 0], sizes = [8, 1], strides = [1, 1]} : vector<8x2xf32> to vector<8x1xf32>
    %23 = vector.broadcast %22 : vector<8x1xf32> to vector<8x16xf32>
    %24 = arith.subf %1, %23 : vector<8x16xf32>
    %25 = vector.extract_strided_slice %21 {offsets = [0, 1], sizes = [8, 1], strides = [1, 1]} : vector<8x2xf32> to vector<8x1xf32>
    %26 = vector.broadcast %25 : vector<8x1xf32> to vector<8x16xf32>
    %27 = arith.mulf %24, %26 : vector<8x16xf32>
    %c0_11 = arith.constant 0 : index
    %c0_12 = arith.constant 0 : index
    %28 = vector.load %arg2[%c0_11, %c0_12] : memref<8x1xf32, #tpu.memory_space<vmem>>, vector<8x1xf32>
    %29 = vector.broadcast %28 : vector<8x1xf32> to vector<8x16xf32>
    %30 = arith.mulf %27, %29 : vector<8x16xf32>
    %c0_13 = arith.constant 0 : index
    %c0_14 = arith.constant 0 : index
    %31 = vector.load %arg3[%c0_13, %c0_14] : memref<8x1xf32, #tpu.memory_space<vmem>>, vector<8x1xf32>
    %32 = vector.broadcast %31 : vector<8x1xf32> to vector<8x16xf32>
    %33 = arith.addf %30, %32 : vector<8x16xf32>
    %34 = arith.negf %33 : vector<8x16xf32>
    %35 = math.exp %34 : vector<8x16xf32>
    %cst_15 = arith.constant 1.000000e+00 : f32
    %36 = vector.broadcast %cst_15 : f32 to vector<8x16xf32>
    %37 = arith.addf %36, %35 : vector<8x16xf32>
    %38 = arith.divf %36, %37 : vector<8x16xf32>
    %39 = arith.mulf %33, %38 : vector<8x16xf32>
    %40 = tpu.iota {dimensions = array<i32: 1>} : vector<1x16xi32>
    %c0_i32 = arith.constant 0 : i32
    %41 = vector.broadcast %c0_i32 : i32 to vector<1x16xi32>
    %42 = arith.cmpi eq, %40, %41 : vector<1x16xi32>
    %c1_i32 = arith.constant 1 : i32
    %43 = tpu.dynamic_rotate %39 by %c1_i32 dim 1 : vector<8x16xf32>, i32 -> vector<8x16xf32>
    %cst_16 = arith.constant 0.000000e+00 : f32
    %44 = vector.shape_cast %42 : vector<1x16xi1> to vector<1x16xi1>
    %45 = vector.broadcast %44 : vector<1x16xi1> to vector<8x16xi1>
    %46 = vector.broadcast %cst_16 : f32 to vector<8x16xf32>
    %47 = arith.select %45, %46, %43 : vector<8x16xi1>, vector<8x16xf32>
    %48 = arith.truncf %47 : vector<8x16xf32> to vector<8x16xbf16>
    %c15_i32 = arith.constant 15 : i32
    %49 = vector.broadcast %c15_i32 : i32 to vector<1x16xi32>
    %50 = arith.cmpi eq, %40, %49 : vector<1x16xi32>
    %c15_i32_17 = arith.constant 15 : i32
    %51 = tpu.dynamic_rotate %39 by %c15_i32_17 dim 1 : vector<8x16xf32>, i32 -> vector<8x16xf32>
    %cst_18 = arith.constant 0.000000e+00 : f32
    %52 = vector.shape_cast %50 : vector<1x16xi1> to vector<1x16xi1>
    %53 = vector.broadcast %52 : vector<1x16xi1> to vector<8x16xi1>
    %54 = vector.broadcast %cst_18 : f32 to vector<8x16xf32>
    %55 = arith.select %53, %54, %51 : vector<8x16xi1>, vector<8x16xf32>
    %56 = arith.truncf %55 : vector<8x16xf32> to vector<8x16xbf16>
    %57 = arith.truncf %39 : vector<8x16xf32> to vector<8x16xbf16>
    %c0_19 = arith.constant 0 : index
    %c0_20 = arith.constant 0 : index
    %58 = vector.load %arg7[%c0_19, %c0_20] : memref<16x1xf32, #tpu.memory_space<vmem>>, vector<16x1xf32>
    %c0_21 = arith.constant 0 : index
    %c0_22 = arith.constant 0 : index
    %c0_23 = arith.constant 0 : index
    %59 = vector.load %arg6[%c0_21, %c0_22, %c0_23] : memref<3x16x8xbf16, #tpu.memory_space<vmem>>, vector<1x16x8xbf16>
    %60 = vector.shape_cast %59 : vector<1x16x8xbf16> to vector<16x8xbf16>
    %cst_24 = arith.constant dense<0.000000e+00> : vector<16x16xf32>
    %61 = tpu.matmul %60, %48, %cst_24 {dimension_numbers = #tpu.dot_dimension_numbers<[1], [0], [0], [1], [0, 0, 1, 1], [], []>} : vector<16x8xbf16>, vector<8x16xbf16>, vector<16x16xf32> -> vector<16x16xf32>
    %62 = vector.broadcast %58 : vector<16x1xf32> to vector<16x16xf32>
    %63 = arith.addf %62, %61 : vector<16x16xf32>
    %c1 = arith.constant 1 : index
    %c0_25 = arith.constant 0 : index
    %c0_26 = arith.constant 0 : index
    %64 = vector.load %arg6[%c1, %c0_25, %c0_26] : memref<3x16x8xbf16, #tpu.memory_space<vmem>>, vector<1x16x8xbf16>
    %65 = vector.shape_cast %64 : vector<1x16x8xbf16> to vector<16x8xbf16>
    %cst_27 = arith.constant dense<0.000000e+00> : vector<16x16xf32>
    %66 = tpu.matmul %65, %57, %cst_27 {dimension_numbers = #tpu.dot_dimension_numbers<[1], [0], [0], [1], [0, 0, 1, 1], [], []>} : vector<16x8xbf16>, vector<8x16xbf16>, vector<16x16xf32> -> vector<16x16xf32>
    %67 = arith.addf %63, %66 : vector<16x16xf32>
    %c2 = arith.constant 2 : index
    %c0_28 = arith.constant 0 : index
    %c0_29 = arith.constant 0 : index
    %68 = vector.load %arg6[%c2, %c0_28, %c0_29] : memref<3x16x8xbf16, #tpu.memory_space<vmem>>, vector<1x16x8xbf16>
    %69 = vector.shape_cast %68 : vector<1x16x8xbf16> to vector<16x8xbf16>
    %cst_30 = arith.constant dense<0.000000e+00> : vector<16x16xf32>
    %70 = tpu.matmul %69, %56, %cst_30 {dimension_numbers = #tpu.dot_dimension_numbers<[1], [0], [0], [1], [0, 0, 1, 1], [], []>} : vector<16x8xbf16>, vector<8x16xbf16>, vector<16x16xf32> -> vector<16x16xf32>
    %71 = arith.addf %67, %70 : vector<16x16xf32>
    %cst_31 = arith.constant dense<0.000000e+00> : vector<16xf32>
    %72 = vector.multi_reduction <add>, %71, %cst_31 [1] : vector<16x16xf32> to vector<16xf32>
    %73 = vector.shape_cast %72 : vector<16xf32> to vector<16x1xf32>
    %74 = arith.mulf %71, %71 : vector<16x16xf32>
    %cst_32 = arith.constant dense<0.000000e+00> : vector<16xf32>
    %75 = vector.multi_reduction <add>, %74, %cst_32 [1] : vector<16x16xf32> to vector<16xf32>
    %76 = vector.shape_cast %75 : vector<16xf32> to vector<16x1xf32>
    %77 = tpu.concatenate %73, %76 in 1 : vector<16x1xf32>, vector<16x1xf32> -> vector<16x2xf32>
    %c0_33 = arith.constant 0 : index
    %c0_34 = arith.constant 0 : index
    %78 = vector.load %arg11[%c0_33, %c0_34] : memref<4x16xf32, #tpu.memory_space<vmem>>, vector<4x16xf32>
    %cst_35 = arith.constant dense<0.000000e+00> : vector<4x2xf32>
    %79 = tpu.matmul %78, %77, %cst_35 {dimension_numbers = #tpu.dot_dimension_numbers<[1], [0], [0], [1], [0, 0, 1, 1], [], []>} : vector<4x16xf32>, vector<16x2xf32>, vector<4x2xf32> -> vector<4x2xf32>
    %cst_36 = arith.constant 6.400000e+01 : f32
    %80 = vector.broadcast %cst_36 : f32 to vector<4x2xf32>
    %81 = arith.divf %79, %80 : vector<4x2xf32>
    %82 = vector.extract_strided_slice %81 {offsets = [0, 0], sizes = [4, 1], strides = [1, 1]} : vector<4x2xf32> to vector<4x1xf32>
    %83 = vector.extract_strided_slice %81 {offsets = [0, 1], sizes = [4, 1], strides = [1, 1]} : vector<4x2xf32> to vector<4x1xf32>
    %84 = arith.mulf %82, %82 : vector<4x1xf32>
    %85 = arith.subf %83, %84 : vector<4x1xf32>
    %cst_37 = arith.constant 9.99999974E-6 : f32
    %86 = vector.broadcast %cst_37 : f32 to vector<4x1xf32>
    %87 = arith.addf %85, %86 : vector<4x1xf32>
    %88 = math.rsqrt %87 : vector<4x1xf32>
    %c0_38 = arith.constant 0 : index
    %c0_39 = arith.constant 0 : index
    %89 = vector.load %arg10[%c0_38, %c0_39] : memref<16x4xf32, #tpu.memory_space<vmem>>, vector<16x4xf32>
    %90 = tpu.concatenate %82, %88 in 1 : vector<4x1xf32>, vector<4x1xf32> -> vector<4x2xf32>
    %cst_40 = arith.constant dense<0.000000e+00> : vector<16x2xf32>
    %91 = tpu.matmul %89, %90, %cst_40 {dimension_numbers = #tpu.dot_dimension_numbers<[1], [0], [0], [1], [0, 0, 1, 1], [], []>} : vector<16x4xf32>, vector<4x2xf32>, vector<16x2xf32> -> vector<16x2xf32>
    %92 = vector.extract_strided_slice %91 {offsets = [0, 0], sizes = [16, 1], strides = [1, 1]} : vector<16x2xf32> to vector<16x1xf32>
    %93 = vector.broadcast %92 : vector<16x1xf32> to vector<16x16xf32>
    %94 = arith.subf %71, %93 : vector<16x16xf32>
    %95 = vector.extract_strided_slice %91 {offsets = [0, 1], sizes = [16, 1], strides = [1, 1]} : vector<16x2xf32> to vector<16x1xf32>
    %96 = vector.broadcast %95 : vector<16x1xf32> to vector<16x16xf32>
    %97 = arith.mulf %94, %96 : vector<16x16xf32>
    %c0_41 = arith.constant 0 : index
    %c0_42 = arith.constant 0 : index
    %98 = vector.load %arg8[%c0_41, %c0_42] : memref<16x1xf32, #tpu.memory_space<vmem>>, vector<16x1xf32>
    %99 = vector.broadcast %98 : vector<16x1xf32> to vector<16x16xf32>
    %100 = arith.mulf %97, %99 : vector<16x16xf32>
    %c0_43 = arith.constant 0 : index
    %c0_44 = arith.constant 0 : index
    %101 = vector.load %arg9[%c0_43, %c0_44] : memref<16x1xf32, #tpu.memory_space<vmem>>, vector<16x1xf32>
    %102 = vector.broadcast %101 : vector<16x1xf32> to vector<16x16xf32>
    %103 = arith.addf %100, %102 : vector<16x16xf32>
    %104 = arith.negf %103 : vector<16x16xf32>
    %105 = math.exp %104 : vector<16x16xf32>
    %cst_45 = arith.constant 1.000000e+00 : f32
    %106 = vector.broadcast %cst_45 : f32 to vector<16x16xf32>
    %107 = arith.addf %106, %105 : vector<16x16xf32>
    %108 = arith.divf %106, %107 : vector<16x16xf32>
    %109 = arith.mulf %103, %108 : vector<16x16xf32>
    %110 = tpu.iota {dimensions = array<i32: 1>} : vector<1x16xi32>
    %c0_i32_46 = arith.constant 0 : i32
    %111 = vector.broadcast %c0_i32_46 : i32 to vector<1x16xi32>
    %112 = arith.cmpi eq, %110, %111 : vector<1x16xi32>
    %c1_i32_47 = arith.constant 1 : i32
    %113 = tpu.dynamic_rotate %109 by %c1_i32_47 dim 1 : vector<16x16xf32>, i32 -> vector<16x16xf32>
    %cst_48 = arith.constant 0.000000e+00 : f32
    %114 = vector.shape_cast %112 : vector<1x16xi1> to vector<1x16xi1>
    %115 = vector.broadcast %114 : vector<1x16xi1> to vector<16x16xi1>
    %116 = vector.broadcast %cst_48 : f32 to vector<16x16xf32>
    %117 = arith.select %115, %116, %113 : vector<16x16xi1>, vector<16x16xf32>
    %118 = arith.truncf %117 : vector<16x16xf32> to vector<16x16xbf16>
    %c15_i32_49 = arith.constant 15 : i32
    %119 = vector.broadcast %c15_i32_49 : i32 to vector<1x16xi32>
    %120 = arith.cmpi eq, %110, %119 : vector<1x16xi32>
    %c15_i32_50 = arith.constant 15 : i32
    %121 = tpu.dynamic_rotate %109 by %c15_i32_50 dim 1 : vector<16x16xf32>, i32 -> vector<16x16xf32>
    %cst_51 = arith.constant 0.000000e+00 : f32
    %122 = vector.shape_cast %120 : vector<1x16xi1> to vector<1x16xi1>
    %123 = vector.broadcast %122 : vector<1x16xi1> to vector<16x16xi1>
    %124 = vector.broadcast %cst_51 : f32 to vector<16x16xf32>
    %125 = arith.select %123, %124, %121 : vector<16x16xi1>, vector<16x16xf32>
    %126 = arith.truncf %125 : vector<16x16xf32> to vector<16x16xbf16>
    %127 = arith.truncf %109 : vector<16x16xf32> to vector<16x16xbf16>
    %c0_52 = arith.constant 0 : index
    %c0_53 = arith.constant 0 : index
    %128 = vector.load %arg13[%c0_52, %c0_53] : memref<16x1xf32, #tpu.memory_space<vmem>>, vector<16x1xf32>
    %c0_54 = arith.constant 0 : index
    %c0_55 = arith.constant 0 : index
    %c0_56 = arith.constant 0 : index
    %129 = vector.load %arg12[%c0_54, %c0_55, %c0_56] : memref<3x16x16xbf16, #tpu.memory_space<vmem>>, vector<1x16x16xbf16>
    %130 = vector.shape_cast %129 : vector<1x16x16xbf16> to vector<16x16xbf16>
    %cst_57 = arith.constant dense<0.000000e+00> : vector<16x16xf32>
    %131 = tpu.matmul %130, %118, %cst_57 {dimension_numbers = #tpu.dot_dimension_numbers<[1], [0], [0], [1], [0, 0, 1, 1], [], []>} : vector<16x16xbf16>, vector<16x16xbf16>, vector<16x16xf32> -> vector<16x16xf32>
    %132 = vector.broadcast %128 : vector<16x1xf32> to vector<16x16xf32>
    %133 = arith.addf %132, %131 : vector<16x16xf32>
    %c1_58 = arith.constant 1 : index
    %c0_59 = arith.constant 0 : index
    %c0_60 = arith.constant 0 : index
    %134 = vector.load %arg12[%c1_58, %c0_59, %c0_60] : memref<3x16x16xbf16, #tpu.memory_space<vmem>>, vector<1x16x16xbf16>
    %135 = vector.shape_cast %134 : vector<1x16x16xbf16> to vector<16x16xbf16>
    %cst_61 = arith.constant dense<0.000000e+00> : vector<16x16xf32>
    %136 = tpu.matmul %135, %127, %cst_61 {dimension_numbers = #tpu.dot_dimension_numbers<[1], [0], [0], [1], [0, 0, 1, 1], [], []>} : vector<16x16xbf16>, vector<16x16xbf16>, vector<16x16xf32> -> vector<16x16xf32>
    %137 = arith.addf %133, %136 : vector<16x16xf32>
    %c2_62 = arith.constant 2 : index
    %c0_63 = arith.constant 0 : index
    %c0_64 = arith.constant 0 : index
    %138 = vector.load %arg12[%c2_62, %c0_63, %c0_64] : memref<3x16x16xbf16, #tpu.memory_space<vmem>>, vector<1x16x16xbf16>
    %139 = vector.shape_cast %138 : vector<1x16x16xbf16> to vector<16x16xbf16>
    %cst_65 = arith.constant dense<0.000000e+00> : vector<16x16xf32>
    %140 = tpu.matmul %139, %126, %cst_65 {dimension_numbers = #tpu.dot_dimension_numbers<[1], [0], [0], [1], [0, 0, 1, 1], [], []>} : vector<16x16xbf16>, vector<16x16xbf16>, vector<16x16xf32> -> vector<16x16xf32>
    %141 = arith.addf %137, %140 : vector<16x16xf32>
    %c0_66 = arith.constant 0 : index
    %c0_67 = arith.constant 0 : index
    %142 = vector.load %arg14[%c0_66, %c0_67] : memref<16x8xbf16, #tpu.memory_space<vmem>>, vector<16x8xbf16>
    %143 = arith.truncf %1 : vector<8x16xf32> to vector<8x16xbf16>
    %cst_68 = arith.constant dense<0.000000e+00> : vector<16x16xf32>
    %144 = tpu.matmul %142, %143, %cst_68 {dimension_numbers = #tpu.dot_dimension_numbers<[1], [0], [0], [1], [0, 0, 1, 1], [], []>} : vector<16x8xbf16>, vector<8x16xbf16>, vector<16x16xf32> -> vector<16x16xf32>
    %c0_69 = arith.constant 0 : index
    %c0_70 = arith.constant 0 : index
    %145 = vector.load %arg15[%c0_69, %c0_70] : memref<16x1xf32, #tpu.memory_space<vmem>>, vector<16x1xf32>
    %146 = vector.broadcast %145 : vector<16x1xf32> to vector<16x16xf32>
    %147 = arith.addf %144, %146 : vector<16x16xf32>
    %148 = arith.addf %141, %147 : vector<16x16xf32>
    %cst_71 = arith.constant 0.707106769 : f32
    %149 = vector.broadcast %cst_71 : f32 to vector<16x16xf32>
    %150 = arith.mulf %148, %149 : vector<16x16xf32>
    %c0_72 = arith.constant 0 : index
    %c0_73 = arith.constant 0 : index
    %c0_74 = arith.constant 0 : index
    %151 = vector.load %arg16[%c0_72, %c0_73, %c0_74] : memref<1x16x16xf32, #tpu.memory_space<vmem>>, vector<1x16x16xf32>
    %152 = vector.shape_cast %151 : vector<1x16x16xf32> to vector<16x16xf32>
    %153 = vector.shape_cast %150 : vector<16x16xf32> to vector<1x16x16xf32>
    tpu.vector_store %arg16[%c0_72, %c0_73, %c0_74], %153 {strides = array<i32>} : memref<1x16x16xf32, #tpu.memory_space<vmem>>, vector<1x16x16xf32>,
    return
  }
  func.func @transform_0(%arg0: i32) -> (i32, i32, i32) {
    %c0_i32 = arith.constant 0 : i32
    %c0_i32_0 = arith.constant 0 : i32
    %c0_i32_1 = arith.constant 0 : i32
    return %arg0, %c0_i32, %c0_i32_0 : i32, i32, i32
  }
  func.func @transform_1(%arg0: i32) -> (i32, i32) {
    %c0_i32 = arith.constant 0 : i32
    %c0_i32_0 = arith.constant 0 : i32
    %c0_i32_1 = arith.constant 0 : i32
    return %c0_i32, %c0_i32_0 : i32, i32
  }
  func.func @transform_2(%arg0: i32) -> (i32, i32) {
    %c0_i32 = arith.constant 0 : i32
    %c0_i32_0 = arith.constant 0 : i32
    %c0_i32_1 = arith.constant 0 : i32
    return %c0_i32, %c0_i32_0 : i32, i32
  }
  func.func @transform_3(%arg0: i32) -> (i32, i32) {
    %c0_i32 = arith.constant 0 : i32
    %c0_i32_0 = arith.constant 0 : i32
    %c0_i32_1 = arith.constant 0 : i32
    return %c0_i32, %c0_i32_0 : i32, i32
  }
  func.func @transform_4(%arg0: i32) -> (i32, i32) {
    %c0_i32 = arith.constant 0 : i32
    %c0_i32_0 = arith.constant 0 : i32
    %c0_i32_1 = arith.constant 0 : i32
    return %c0_i32, %c0_i32_0 : i32, i32
  }
  func.func @transform_5(%arg0: i32) -> (i32, i32, i32) {
    %c0_i32 = arith.constant 0 : i32
    %c0_i32_0 = arith.constant 0 : i32
    %c0_i32_1 = arith.constant 0 : i32
    %c0_i32_2 = arith.constant 0 : i32
    return %c0_i32, %c0_i32_0, %c0_i32_1 : i32, i32, i32
  }
  func.func @transform_6(%arg0: i32) -> (i32, i32) {
    %c0_i32 = arith.constant 0 : i32
    %c0_i32_0 = arith.constant 0 : i32
    %c0_i32_1 = arith.constant 0 : i32
    return %c0_i32, %c0_i32_0 : i32, i32
  }
  func.func @transform_7(%arg0: i32) -> (i32, i32) {
    %c0_i32 = arith.constant 0 : i32
    %c0_i32_0 = arith.constant 0 : i32
    %c0_i32_1 = arith.constant 0 : i32
    return %c0_i32, %c0_i32_0 : i32, i32
  }
  func.func @transform_8(%arg0: i32) -> (i32, i32) {
    %c0_i32 = arith.constant 0 : i32
    %c0_i32_0 = arith.constant 0 : i32
    %c0_i32_1 = arith.constant 0 : i32
    return %c0_i32, %c0_i32_0 : i32, i32
  }
  func.func @transform_9(%arg0: i32) -> (i32, i32) {
    %c0_i32 = arith.constant 0 : i32
    %c0_i32_0 = arith.constant 0 : i32
    %c0_i32_1 = arith.constant 0 : i32
    return %c0_i32, %c0_i32_0 : i32, i32
  }
  func.func @transform_10(%arg0: i32) -> (i32, i32) {
    %c0_i32 = arith.constant 0 : i32
    %c0_i32_0 = arith.constant 0 : i32
    %c0_i32_1 = arith.constant 0 : i32
    return %c0_i32, %c0_i32_0 : i32, i32
  }
  func.func @transform_11(%arg0: i32) -> (i32, i32, i32) {
    %c0_i32 = arith.constant 0 : i32
    %c0_i32_0 = arith.constant 0 : i32
    %c0_i32_1 = arith.constant 0 : i32
    %c0_i32_2 = arith.constant 0 : i32
    return %c0_i32, %c0_i32_0, %c0_i32_1 : i32, i32, i32
  }
  func.func @transform_12(%arg0: i32) -> (i32, i32) {
    %c0_i32 = arith.constant 0 : i32
    %c0_i32_0 = arith.constant 0 : i32
    %c0_i32_1 = arith.constant 0 : i32
    return %c0_i32, %c0_i32_0 : i32, i32
  }
  func.func @transform_13(%arg0: i32) -> (i32, i32) {
    %c0_i32 = arith.constant 0 : i32
    %c0_i32_0 = arith.constant 0 : i32
    %c0_i32_1 = arith.constant 0 : i32
    return %c0_i32, %c0_i32_0 : i32, i32
  }
  func.func @transform_14(%arg0: i32) -> (i32, i32) {
    %c0_i32 = arith.constant 0 : i32
    %c0_i32_0 = arith.constant 0 : i32
    %c0_i32_1 = arith.constant 0 : i32
    return %c0_i32, %c0_i32_0 : i32, i32
  }
  func.func @transform_15(%arg0: i32) -> (i32, i32, i32) {
    %c0_i32 = arith.constant 0 : i32
    %c0_i32_0 = arith.constant 0 : i32
    %c0_i32_1 = arith.constant 0 : i32
    return %arg0, %c0_i32, %c0_i32_0 : i32, i32, i32
  }
}

</mosaic_0001>

<llo_original>
// kernel: tpu_custom_call.1
$region0: #{tpu_custom_call.1}
  #allocation0 [shape = 'u32[]', space=smem, size = 0x4, offset = 0x4, fixed_abs, tag = 'smem constant byte address 0x4 - core index']
  #allocation1 [shape = 'u32[144,128]{1,0:T(1,128)}', space=vmem, size = 0x12000, scoped, tag = 'internal scratch']
  %s0 = inlined_call_operand.vmem [shape: f32[2,8,16], index: 0, kind: input, shape index: {}]
  %s1 = inlined_call_operand.vmem [shape: f32[8,1], index: 1, kind: input, shape index: {}]
  %s2 = inlined_call_operand.vmem [shape: f32[8,1], index: 2, kind: input, shape index: {}]
  %s3 = inlined_call_operand.vmem [shape: f32[8,4], index: 3, kind: input, shape index: {}]
  %s4 = inlined_call_operand.vmem [shape: f32[4,8], index: 4, kind: input, shape index: {}]
  %s5 = inlined_call_operand.vmem [shape: bf16[3,16,8], index: 5, kind: input, shape index: {}]
  %s6 = inlined_call_operand.vmem [shape: f32[16,1], index: 6, kind: input, shape index: {}]
  %s7 = inlined_call_operand.vmem [shape: f32[16,1], index: 7, kind: input, shape index: {}]
  %s8 = inlined_call_operand.vmem [shape: f32[16,1], index: 8, kind: input, shape index: {}]
  %s9 = inlined_call_operand.vmem [shape: f32[16,4], index: 9, kind: input, shape index: {}]
  %s10 = inlined_call_operand.vmem [shape: f32[4,16], index: 10, kind: input, shape index: {}]
  %s11 = inlined_call_operand.vmem [shape: bf16[3,16,16], index: 11, kind: input, shape index: {}]
  %s12 = inlined_call_operand.vmem [shape: f32[16,1], index: 12, kind: input, shape index: {}]
  %s13 = inlined_call_operand.vmem [shape: bf16[16,8], index: 13, kind: input, shape index: {}]
  %s14 = inlined_call_operand.vmem [shape: f32[16,1], index: 14, kind: input, shape index: {}]
  %s15 = inlined_call_operand.hbm [shape: f32[2,16,16], index: 15, kind: output, shape index: {}]
  %s16 = sld [smem:[#allocation0]]
  $region93: #{tpu_custom_call.1} parent=0
    _
  %s18 = ssub.s32 1, %s16
  %s19 = scalar_select 0, %s18, %s16
  $region1: #{tpu_custom_call.1} parent=0
    #allocation2 [shape = 'u8[16384]{0}', space=vmem, size = 0x4000, scoped, tag = 'output window, operand 0']
    #allocation3 [shape = 's32[2]{0}', space=sflag, size = 0x8, scoped, tag = 'scoped memory for tpu_custom_call.1']
    %20 = vsyncpa [#allocation3], 0
    %s21 = scalar_lea.sflag [#allocation3], 1
    %22 = vsyncpa %s21, 0
    loop: start=0, step=1, limit=4
    $region2: #{tpu_custom_call.1} parent=1 // loop_pre_header
      _
    $region3: #{tpu_custom_call.1} parent=1 // loop_header
      %s24 = sphi 0, %s28
      %p25 = scmp.ge.s32.totalorder %s24, 4
      %s34 = sphi 0, %s36
      %s37 = sphi 0, %s34
      %s38 = sphi 0, %s37
      %s54 = sphi 0, %s38
      %s58 = sphi 0, %s58
      %s60 = sphi 0, %s58
      %s61 = sphi 0, %s60
      %s75 = sphi 0, %s61
      %s79 = sphi 0, %s79
      %s81 = sphi 0, %s79
      %s82 = sphi 0, %s81
      %s96 = sphi 0, %s82
      %s100 = sphi 0, %s100
      %s102 = sphi 0, %s100
      %s103 = sphi 0, %s102
      %s117 = sphi 0, %s103
      %s121 = sphi 0, %s121
      %s123 = sphi 0, %s121
      %s124 = sphi 0, %s123
      %s138 = sphi 0, %s124
      %s142 = sphi 0, %s142
      %s144 = sphi 0, %s142
      %s145 = sphi 0, %s144
      %s159 = sphi 0, %s145
      %s163 = sphi 0, %s163
      %s165 = sphi 0, %s163
      %s166 = sphi 0, %s165
      %s180 = sphi 0, %s166
      %s184 = sphi 0, %s184
      %s186 = sphi 0, %s184
      %s187 = sphi 0, %s186
      %s201 = sphi 0, %s187
      %s205 = sphi 0, %s205
      %s207 = sphi 0, %s205
      %s208 = sphi 0, %s207
      %s222 = sphi 0, %s208
      %s226 = sphi 0, %s226
      %s228 = sphi 0, %s226
      %s229 = sphi 0, %s228
      %s243 = sphi 0, %s229
      %s247 = sphi 0, %s247
      %s249 = sphi 0, %s247
      %s250 = sphi 0, %s249
      %s264 = sphi 0, %s250
      %s268 = sphi 0, %s268
      %s270 = sphi 0, %s268
      %s271 = sphi 0, %s270
      %s285 = sphi 0, %s271
      %s289 = sphi 0, %s289
      %s291 = sphi 0, %s289
      %s292 = sphi 0, %s291
      %s306 = sphi 0, %s292
      %s310 = sphi 0, %s310
      %s312 = sphi 0, %s310
      %s313 = sphi 0, %s312
      %s327 = sphi 0, %s313
      %s331 = sphi 0, %s331
      %s333 = sphi 0, %s331
      %s334 = sphi 0, %s333
      %s348 = sphi 0, %s334
      %s354 = sphi 0, %s356
      %s357 = sphi 0, %s354
      %s358 = sphi 0, %s357
      %s374 = sphi 0, %s358
    $region4: #{tpu_custom_call.1} parent=1 // loop_header_branch
      %27 = sbr.rel (%p25) target = $region8
    $region5: #{tpu_custom_call.1} parent=1 // loop_body
      %s29 = ssub.s32 %s24, 1
      %s30 = ssub.s32 %s24, 2
      %s31 = sadd.s32 %s24, 1
      %s32 = ssub.s32 %s24, %s31
      %p33 = scmp.eq.s32.totalorder %s32, 0
      %s35 = sadd.s32 %s34, 1
      %s36 = scalar_select %p33, %s34, %s35
      %p39 = pneg %p33
      %p40 = scmp.eq.s32.totalorder %s24, 1
      %p41 = por %p39, %p40
      %p42 = scmp.ne.s32.totalorder %s34, %s37
      %p43 = scmp.eq.s32.totalorder %s24, 0
      %p44 = por %p42, %p43
      %p45 = scmp.ne.s32.totalorder %s34, %s37
      %p46 = scmp.eq.s32.totalorder %s29, 1
      %p47 = por %p45, %p46
      %p48 = scmp.ne.s32.totalorder %s37, %s38
      %p49 = scmp.eq.s32.totalorder %s29, 0
      %p50 = por %p48, %p49
      %p51 = scmp.ne.s32.totalorder %s37, %s38
      %p52 = scmp.eq.s32.totalorder %s30, 1
      %p53 = por %p51, %p52
      %p55 = scmp.ne.s32.totalorder %s38, %s54
      %p56 = scmp.eq.s32.totalorder %s30, 0
      %p57 = por %p55, %p56
      %s59 = sadd.s32 %s58, 1
      %p62 = scmp.eq.s32.totalorder %s24, 1
      %p63 = scmp.ne.s32.totalorder %s58, %s60
      %p64 = scmp.eq.s32.totalorder %s24, 0
      %p65 = por %p63, %p64
      %p66 = scmp.ne.s32.totalorder %s58, %s60
      %p67 = scmp.eq.s32.totalorder %s29, 1
      %p68 = por %p66, %p67
      %p69 = scmp.ne.s32.totalorder %s60, %s61
      %p70 = scmp.eq.s32.totalorder %s29, 0
      %p71 = por %p69, %p70
      %p72 = scmp.ne.s32.totalorder %s60, %s61
      %p73 = scmp.eq.s32.totalorder %s30, 1
      %p74 = por %p72, %p73
      %p76 = scmp.ne.s32.totalorder %s61, %s75
      %p77 = scmp.eq.s32.totalorder %s30, 0
      %p78 = por %p76, %p77
      %s80 = sadd.s32 %s79, 1
      %p83 = scmp.eq.s32.totalorder %s24, 1
      %p84 = scmp.ne.s32.totalorder %s79, %s81
      %p85 = scmp.eq.s32.totalorder %s24, 0
      %p86 = por %p84, %p85
      %p87 = scmp.ne.s32.totalorder %s79, %s81
      %p88 = scmp.eq.s32.totalorder %s29, 1
      %p89 = por %p87, %p88
      %p90 = scmp.ne.s32.totalorder %s81, %s82
      %p91 = scmp.eq.s32.totalorder %s29, 0
      %p92 = por %p90, %p91
      %p93 = scmp.ne.s32.totalorder %s81, %s82
      %p94 = scmp.eq.s32.totalorder %s30, 1
      %p95 = por %p93, %p94
      %p97 = scmp.ne.s32.totalorder %s82, %s96
      %p98 = scmp.eq.s32.totalorder %s30, 0
      %p99 = por %p97, %p98
      %s101 = sadd.s32 %s100, 1
      %p104 = scmp.eq.s32.totalorder %s24, 1
      %p105 = scmp.ne.s32.totalorder %s100, %s102
      %p106 = scmp.eq.s32.totalorder %s24, 0
      %p107 = por %p105, %p106
      %p108 = scmp.ne.s32.totalorder %s100, %s102
      %p109 = scmp.eq.s32.totalorder %s29, 1
      %p110 = por %p108, %p109
      %p111 = scmp.ne.s32.totalorder %s102, %s103
      %p112 = scmp.eq.s32.totalorder %s29, 0
      %p113 = por %p111, %p112
      %p114 = scmp.ne.s32.totalorder %s102, %s103
      %p115 = scmp.eq.s32.totalorder %s30, 1
      %p116 = por %p114, %p115
      %p118 = scmp.ne.s32.totalorder %s103, %s117
      %p119 = scmp.eq.s32.totalorder %s30, 0
      %p120 = por %p118, %p119
      %s122 = sadd.s32 %s121, 1
      %p125 = scmp.eq.s32.totalorder %s24, 1
      %p126 = scmp.ne.s32.totalorder %s121, %s123
      %p127 = scmp.eq.s32.totalorder %s24, 0
      %p128 = por %p126, %p127
      %p129 = scmp.ne.s32.totalorder %s121, %s123
      %p130 = scmp.eq.s32.totalorder %s29, 1
      %p131 = por %p129, %p130
      %p132 = scmp.ne.s32.totalorder %s123, %s124
      %p133 = scmp.eq.s32.totalorder %s29, 0
      %p134 = por %p132, %p133
      %p135 = scmp.ne.s32.totalorder %s123, %s124
      %p136 = scmp.eq.s32.totalorder %s30, 1
      %p137 = por %p135, %p136
      %p139 = scmp.ne.s32.totalorder %s124, %s138
      %p140 = scmp.eq.s32.totalorder %s30, 0
      %p141 = por %p139, %p140
      %s143 = sadd.s32 %s142, 1
      %p146 = scmp.eq.s32.totalorder %s24, 1
      %p147 = scmp.ne.s32.totalorder %s142, %s144
      %p148 = scmp.eq.s32.totalorder %s24, 0
      %p149 = por %p147, %p148
      %p150 = scmp.ne.s32.totalorder %s142, %s144
      %p151 = scmp.eq.s32.totalorder %s29, 1
      %p152 = por %p150, %p151
      %p153 = scmp.ne.s32.totalorder %s144, %s145
      %p154 = scmp.eq.s32.totalorder %s29, 0
      %p155 = por %p153, %p154
      %p156 = scmp.ne.s32.totalorder %s144, %s145
      %p157 = scmp.eq.s32.totalorder %s30, 1
      %p158 = por %p156, %p157
      %p160 = scmp.ne.s32.totalorder %s145, %s159
      %p161 = scmp.eq.s32.totalorder %s30, 0
      %p162 = por %p160, %p161
      %s164 = sadd.s32 %s163, 1
      %p167 = scmp.eq.s32.totalorder %s24, 1
      %p168 = scmp.ne.s32.totalorder %s163, %s165
      %p169 = scmp.eq.s32.totalorder %s24, 0
      %p170 = por %p168, %p169
      %p171 = scmp.ne.s32.totalorder %s163, %s165
      %p172 = scmp.eq.s32.totalorder %s29, 1
      %p173 = por %p171, %p172
      %p174 = scmp.ne.s32.totalorder %s165, %s166
      %p175 = scmp.eq.s32.totalorder %s29, 0
      %p176 = por %p174, %p175
      %p177 = scmp.ne.s32.totalorder %s165, %s166
      %p178 = scmp.eq.s32.totalorder %s30, 1
      %p179 = por %p177, %p178
      %p181 = scmp.ne.s32.totalorder %s166, %s180
      %p182 = scmp.eq.s32.totalorder %s30, 0
      %p183 = por %p181, %p182
      %s185 = sadd.s32 %s184, 1
      %p188 = scmp.eq.s32.totalorder %s24, 1
      %p189 = scmp.ne.s32.totalorder %s184, %s186
      %p190 = scmp.eq.s32.totalorder %s24, 0
      %p191 = por %p189, %p190
      %p192 = scmp.ne.s32.totalorder %s184, %s186
      %p193 = scmp.eq.s32.totalorder %s29, 1
      %p194 = por %p192, %p193
      %p195 = scmp.ne.s32.totalorder %s186, %s187
      %p196 = scmp.eq.s32.totalorder %s29, 0
      %p197 = por %p195, %p196
      %p198 = scmp.ne.s32.totalorder %s186, %s187
      %p199 = scmp.eq.s32.totalorder %s30, 1
      %p200 = por %p198, %p199
      %p202 = scmp.ne.s32.totalorder %s187, %s201
      %p203 = scmp.eq.s32.totalorder %s30, 0
      %p204 = por %p202, %p203
      %s206 = sadd.s32 %s205, 1
      %p209 = scmp.eq.s32.totalorder %s24, 1
      %p210 = scmp.ne.s32.totalorder %s205, %s207
      %p211 = scmp.eq.s32.totalorder %s24, 0
      %p212 = por %p210, %p211
      %p213 = scmp.ne.s32.totalorder %s205, %s207
      %p214 = scmp.eq.s32.totalorder %s29, 1
      %p215 = por %p213, %p214
      %p216 = scmp.ne.s32.totalorder %s207, %s208
      %p217 = scmp.eq.s32.totalorder %s29, 0
      %p218 = por %p216, %p217
      %p219 = scmp.ne.s32.totalorder %s207, %s208
      %p220 = scmp.eq.s32.totalorder %s30, 1
      %p221 = por %p219, %p220
      %p223 = scmp.ne.s32.totalorder %s208, %s222
      %p224 = scmp.eq.s32.totalorder %s30, 0
      %p225 = por %p223, %p224
      %s227 = sadd.s32 %s226, 1
      %p230 = scmp.eq.s32.totalorder %s24, 1
      %p231 = scmp.ne.s32.totalorder %s226, %s228
      %p232 = scmp.eq.s32.totalorder %s24, 0
      %p233 = por %p231, %p232
      %p234 = scmp.ne.s32.totalorder %s226, %s228
      %p235 = scmp.eq.s32.totalorder %s29, 1
      %p236 = por %p234, %p235
      %p237 = scmp.ne.s32.totalorder %s228, %s229
      %p238 = scmp.eq.s32.totalorder %s29, 0
      %p239 = por %p237, %p238
      %p240 = scmp.ne.s32.totalorder %s228, %s229
      %p241 = scmp.eq.s32.totalorder %s30, 1
      %p242 = por %p240, %p241
      %p244 = scmp.ne.s32.totalorder %s229, %s243
      %p245 = scmp.eq.s32.totalorder %s30, 0
      %p246 = por %p244, %p245
      %s248 = sadd.s32 %s247, 1
      %p251 = scmp.eq.s32.totalorder %s24, 1
      %p252 = scmp.ne.s32.totalorder %s247, %s249
      %p253 = scmp.eq.s32.totalorder %s24, 0
      %p254 = por %p252, %p253
      %p255 = scmp.ne.s32.totalorder %s247, %s249
      %p256 = scmp.eq.s32.totalorder %s29, 1
      %p257 = por %p255, %p256
      %p258 = scmp.ne.s32.totalorder %s249, %s250
      %p259 = scmp.eq.s32.totalorder %s29, 0
      %p260 = por %p258, %p259
      %p261 = scmp.ne.s32.totalorder %s249, %s250
      %p262 = scmp.eq.s32.totalorder %s30, 1
      %p263 = por %p261, %p262
      %p265 = scmp.ne.s32.totalorder %s250, %s264
      %p266 = scmp.eq.s32.totalorder %s30, 0
      %p267 = por %p265, %p266
      %s269 = sadd.s32 %s268, 1
      %p272 = scmp.eq.s32.totalorder %s24, 1
      %p273 = scmp.ne.s32.totalorder %s268, %s270
      %p274 = scmp.eq.s32.totalorder %s24, 0
      %p275 = por %p273, %p274
      %p276 = scmp.ne.s32.totalorder %s268, %s270
      %p277 = scmp.eq.s32.totalorder %s29, 1
      %p278 = por %p276, %p277
      %p279 = scmp.ne.s32.totalorder %s270, %s271
      %p280 = scmp.eq.s32.totalorder %s29, 0
      %p281 = por %p279, %p280
      %p282 = scmp.ne.s32.totalorder %s270, %s271
      %p283 = scmp.eq.s32.totalorder %s30, 1
      %p284 = por %p282, %p283
      %p286 = scmp.ne.s32.totalorder %s271, %s285
      %p287 = scmp.eq.s32.totalorder %s30, 0
      %p288 = por %p286, %p287
      %s290 = sadd.s32 %s289, 1
      %p293 = scmp.eq.s32.totalorder %s24, 1
      %p294 = scmp.ne.s32.totalorder %s289, %s291
      %p295 = scmp.eq.s32.totalorder %s24, 0
      %p296 = por %p294, %p295
      %p297 = scmp.ne.s32.totalorder %s289, %s291
      %p298 = scmp.eq.s32.totalorder %s29, 1
      %p299 = por %p297, %p298
      %p300 = scmp.ne.s32.totalorder %s291, %s292
      %p301 = scmp.eq.s32.totalorder %s29, 0
      %p302 = por %p300, %p301
      %p303 = scmp.ne.s32.totalorder %s291, %s292
      %p304 = scmp.eq.s32.totalorder %s30, 1
      %p305 = por %p303, %p304
      %p307 = scmp.ne.s32.totalorder %s292, %s306
      %p308 = scmp.eq.s32.totalorder %s30, 0
      %p309 = por %p307, %p308
      %s311 = sadd.s32 %s310, 1
      %p314 = scmp.eq.s32.totalorder %s24, 1
      %p315 = scmp.ne.s32.totalorder %s310, %s312
      %p316 = scmp.eq.s32.totalorder %s24, 0
      %p317 = por %p315, %p316
      %p318 = scmp.ne.s32.totalorder %s310, %s312
      %p319 = scmp.eq.s32.totalorder %s29, 1
      %p320 = por %p318, %p319
      %p321 = scmp.ne.s32.totalorder %s312, %s313
      %p322 = scmp.eq.s32.totalorder %s29, 0
      %p323 = por %p321, %p322
      %p324 = scmp.ne.s32.totalorder %s312, %s313
      %p325 = scmp.eq.s32.totalorder %s30, 1
      %p326 = por %p324, %p325
      %p328 = scmp.ne.s32.totalorder %s313, %s327
      %p329 = scmp.eq.s32.totalorder %s30, 0
      %p330 = por %p328, %p329
      %s332 = sadd.s32 %s331, 1
      %p335 = scmp.eq.s32.totalorder %s24, 1
      %p336 = scmp.ne.s32.totalorder %s331, %s333
      %p337 = scmp.eq.s32.totalorder %s24, 0
      %p338 = por %p336, %p337
      %p339 = scmp.ne.s32.totalorder %s331, %s333
      %p340 = scmp.eq.s32.totalorder %s29, 1
      %p341 = por %p339, %p340
      %p342 = scmp.ne.s32.totalorder %s333, %s334
      %p343 = scmp.eq.s32.totalorder %s29, 0
      %p344 = por %p342, %p343
      %p345 = scmp.ne.s32.totalorder %s333, %s334
      %p346 = scmp.eq.s32.totalorder %s30, 1
      %p347 = por %p345, %p346
      %p349 = scmp.ne.s32.totalorder %s334, %s348
      %p350 = scmp.eq.s32.totalorder %s30, 0
      %p351 = por %p349, %p350
      %s352 = ssub.s32 %s24, %s31
      %p353 = scmp.eq.s32.totalorder %s352, 0
      %s355 = sadd.s32 %s354, 1
      %s356 = scalar_select %p353, %s354, %s355
      %p359 = pneg %p353
      %p360 = scmp.eq.s32.totalorder %s24, 1
      %p361 = por %p359, %p360
      %p362 = scmp.ne.s32.totalorder %s354, %s357
      %p363 = scmp.eq.s32.totalorder %s24, 0
      %p364 = por %p362, %p363
      %p365 = scmp.ne.s32.totalorder %s354, %s357
      %p366 = scmp.eq.s32.totalorder %s29, 1
      %p367 = por %p365, %p366
      %p368 = scmp.ne.s32.totalorder %s357, %s358
      %p369 = scmp.eq.s32.totalorder %s29, 0
      %p370 = por %p368, %p369
      %p371 = scmp.ne.s32.totalorder %s357, %s358
      %p372 = scmp.eq.s32.totalorder %s30, 1
      %p373 = por %p371, %p372
      %p375 = scmp.ne.s32.totalorder %s358, %s374
      %p376 = scmp.eq.s32.totalorder %s30, 0
      %p377 = por %p375, %p376
      %p378 = scmp.le.s32.totalorder 1, %s24
      %p379 = scmp.lt.s32.totalorder %s24, 3
      %p380 = pnand %p378, %p379
      %p381 = pneg %p380
      // Predicated region
      $region9: #{tpu_custom_call.1} parent=5 // pred_check
        _
      $region10: #{tpu_custom_call.1} parent=5 // pred_check_branch
        %383 = sbr.rel (%p380) target = $region12
      $region11: #{tpu_custom_call.1} parent=5 // pred_region
        %s384 = ssub.s32 %s24, 1
        // Predicated region
        $region13: #{tpu_custom_call.1} parent=11 // pred_check
          %p385 = pneg %p71
        $region14: #{tpu_custom_call.1} parent=11 // pred_check_branch
          %387 = sbr.rel (%p385) target = $region16
        $region15: #{tpu_custom_call.1} parent=11 // pred_region
          _
        $region16: #{tpu_custom_call.1} parent=11 // pred_fallthru
          _
        // Predicated region
        $region17: #{tpu_custom_call.1} parent=11 // pred_check
          %p388 = pneg %p92
        $region18: #{tpu_custom_call.1} parent=11 // pred_check_branch
          %390 = sbr.rel (%p388) target = $region20
        $region19: #{tpu_custom_call.1} parent=11 // pred_region
          _
        $region20: #{tpu_custom_call.1} parent=11 // pred_fallthru
          _
        // Predicated region
        $region21: #{tpu_custom_call.1} parent=11 // pred_check
          %p391 = pneg %p113
        $region22: #{tpu_custom_call.1} parent=11 // pred_check_branch
          %393 = sbr.rel (%p391) target = $region24
        $region23: #{tpu_custom_call.1} parent=11 // pred_region
          _
        $region24: #{tpu_custom_call.1} parent=11 // pred_fallthru
          _
        // Predicated region
        $region25: #{tpu_custom_call.1} parent=11 // pred_check
          %p394 = pneg %p134
        $region26: #{tpu_custom_call.1} parent=11 // pred_check_branch
          %396 = sbr.rel (%p394) target = $region28
        $region27: #{tpu_custom_call.1} parent=11 // pred_region
          _
        $region28: #{tpu_custom_call.1} parent=11 // pred_fallthru
          _
        // Predicated region
        $region29: #{tpu_custom_call.1} parent=11 // pred_check
          %p397 = pneg %p155
        $region30: #{tpu_custom_call.1} parent=11 // pred_check_branch
          %399 = sbr.rel (%p397) target = $region32
        $region31: #{tpu_custom_call.1} parent=11 // pred_region
          _
        $region32: #{tpu_custom_call.1} parent=11 // pred_fallthru
          _
        // Predicated region
        $region33: #{tpu_custom_call.1} parent=11 // pred_check
          %p400 = pneg %p176
        $region34: #{tpu_custom_call.1} parent=11 // pred_check_branch
          %402 = sbr.rel (%p400) target = $region36
        $region35: #{tpu_custom_call.1} parent=11 // pred_region
          _
        $region36: #{tpu_custom_call.1} parent=11 // pred_fallthru
          _
        // Predicated region
        $region37: #{tpu_custom_call.1} parent=11 // pred_check
          %p403 = pneg %p197
        $region38: #{tpu_custom_call.1} parent=11 // pred_check_branch
          %405 = sbr.rel (%p403) target = $region40
        $region39: #{tpu_custom_call.1} parent=11 // pred_region
          _
        $region40: #{tpu_custom_call.1} parent=11 // pred_fallthru
          _
        // Predicated region
        $region41: #{tpu_custom_call.1} parent=11 // pred_check
          %p406 = pneg %p218
        $region42: #{tpu_custom_call.1} parent=11 // pred_check_branch
          %408 = sbr.rel (%p406) target = $region44
        $region43: #{tpu_custom_call.1} parent=11 // pred_region
          _
        $region44: #{tpu_custom_call.1} parent=11 // pred_fallthru
          _
        // Predicated region
        $region45: #{tpu_custom_call.1} parent=11 // pred_check
          %p409 = pneg %p239
        $region46: #{tpu_custom_call.1} parent=11 // pred_check_branch
          %411 = sbr.rel (%p409) target = $region48
        $region47: #{tpu_custom_call.1} parent=11 // pred_region
          _
        $region48: #{tpu_custom_call.1} parent=11 // pred_fallthru
          _
        // Predicated region
        $region49: #{tpu_custom_call.1} parent=11 // pred_check
          %p412 = pneg %p260
        $region50: #{tpu_custom_call.1} parent=11 // pred_check_branch
          %414 = sbr.rel (%p412) target = $region52
        $region51: #{tpu_custom_call.1} parent=11 // pred_region
          _
        $region52: #{tpu_custom_call.1} parent=11 // pred_fallthru
          _
        // Predicated region
        $region53: #{tpu_custom_call.1} parent=11 // pred_check
          %p415 = pneg %p281
        $region54: #{tpu_custom_call.1} parent=11 // pred_check_branch
          %417 = sbr.rel (%p415) target = $region56
        $region55: #{tpu_custom_call.1} parent=11 // pred_region
          _
        $region56: #{tpu_custom_call.1} parent=11 // pred_fallthru
          _
        // Predicated region
        $region57: #{tpu_custom_call.1} parent=11 // pred_check
          %p418 = pneg %p302
        $region58: #{tpu_custom_call.1} parent=11 // pred_check_branch
          %420 = sbr.rel (%p418) target = $region60
        $region59: #{tpu_custom_call.1} parent=11 // pred_region
          _
        $region60: #{tpu_custom_call.1} parent=11 // pred_fallthru
          _
        // Predicated region
        $region61: #{tpu_custom_call.1} parent=11 // pred_check
          %p421 = pneg %p323
        $region62: #{tpu_custom_call.1} parent=11 // pred_check_branch
          %423 = sbr.rel (%p421) target = $region64
        $region63: #{tpu_custom_call.1} parent=11 // pred_region
          _
        $region64: #{tpu_custom_call.1} parent=11 // pred_fallthru
          _
        // Predicated region
        $region65: #{tpu_custom_call.1} parent=11 // pred_check
          %p424 = pneg %p344
        $region66: #{tpu_custom_call.1} parent=11 // pred_check_branch
          %426 = sbr.rel (%p424) target = $region68
        $region67: #{tpu_custom_call.1} parent=11 // pred_region
          _
        $region68: #{tpu_custom_call.1} parent=11 // pred_fallthru
          _
      $region12: #{tpu_custom_call.1} parent=5 // pred_fallthru
        _
      %p427 = scmp.lt.s32.totalorder %s24, 2
      // Predicated region
      $region69: #{tpu_custom_call.1} parent=5 // pred_check
        %p428 = pneg %p427
      $region70: #{tpu_custom_call.1} parent=5 // pred_check_branch
        %430 = sbr.rel (%p428) target = $region72
      $region71: #{tpu_custom_call.1} parent=5 // pred_region
        // Predicated region
        $region73: #{tpu_custom_call.1} parent=71 // pred_check
          %p431 = pneg %p44
        $region74: #{tpu_custom_call.1} parent=71 // pred_check_branch
          %433 = sbr.rel (%p431) target = $region76
        $region75: #{tpu_custom_call.1} parent=71 // pred_region
          %p434 = scmp.lt.s32.totalorder %s24, 1
          %s435 = scalar_select %p434, %s24, 1
          %s436 = smul.addr %s435, 8
          %s437 = scalar_lea.vmem %s0, %s436
        $region76: #{tpu_custom_call.1} parent=71 // pred_fallthru
          _
      $region72: #{tpu_custom_call.1} parent=5 // pred_fallthru
        _
      %p438 = scmp.le.s32.totalorder 1, %s24
      %p439 = scmp.lt.s32.totalorder %s24, 3
      %p440 = pnand %p438, %p439
      %p441 = pneg %p440
      // Predicated region
      $region77: #{tpu_custom_call.1} parent=5 // pred_check
        _
      $region78: #{tpu_custom_call.1} parent=5 // pred_check_branch
        %443 = sbr.rel (%p440) target = $region80
      $region79: #{tpu_custom_call.1} parent=5 // pred_region
        %s444 = ssub.s32 %s24, 1
        %p445 = scmp.lt.s32.totalorder %s29, 1
        %s446 = scalar_select %p445, %s29, 1
        %s447 = smul.addr %s446, 8
        %s448 = scalar_lea.vmem %s0, %s447
        %p449 = pneg %p50
        %p450 = pneg %p47
        %p451 = pneg %p71
        %p452 = pneg %p68
        %p453 = pneg %p92
        %p454 = pneg %p89
        %p455 = pneg %p113
        %p456 = pneg %p110
        %p457 = pneg %p134
        %p458 = pneg %p131
        %p459 = pneg %p155
        %p460 = pneg %p152
        %p461 = pneg %p176
        %p462 = pneg %p173
        %p463 = pneg %p197
        %p464 = pneg %p194
        %p465 = pneg %p218
        %p466 = pneg %p215
        %p467 = pneg %p239
        %p468 = pneg %p236
        %p469 = pneg %p260
        %p470 = pneg %p257
        %p471 = pneg %p281
        %p472 = pneg %p278
        %p473 = pneg %p302
        %p474 = pneg %p299
        %p475 = pneg %p323
        %p476 = pneg %p320
        %p477 = pneg %p344
        %p478 = pneg %p341
        %p479 = pneg %p370
        %p480 = pneg %p367
        %s481 = sand.u32 %s357, 1
        %s482 = scalar_lea.sflag [#allocation3], %s481
        %s483 = sand.u32 %s357, 1
        %s484 = smul.addr %s483, 16
        %s485 = scalar_lea.vmem [#allocation2], %s484
        %p486 = scmp.lt.s32.totalorder %s29, 1
        %s487 = scalar_select %p486, %s29, 1
        %s488 = smul.addr %s487, 8
        %s489 = scalar_lea.vmem %s0, %s488
        %v491 = vld [vmem:[%s489] sm:$0xff]
        %vm492 = vcmask 130048
        %v493 = vsel %vm492, %v491, 0.0
        %494 = vadd.xlane.f32.xlu0 %v493
        %v495 = vpop.xlane.xlu0 %494
        %v496 = vmul.f32 %v491, %v491
        %v497 = vsel %vm492, %v496, 0.0
        %498 = vadd.xlane.f32.xlu0 %v497
        %v499 = vpop.xlane.xlu0 %498
        %vm500 = vcmask 7168
        %v501 = vsel %vm500, %v495, %v499
        %v502 = vld [vmem:[%s4] sm:$0xf]
        %vm503 = vcmask 64512
        %v505 = vsel %vm503, %v502, 0
        %507 = vmatprep.subr.mxu0 0.0
        %508 = vmatpush1.msra.mxu0 %v501
        %509 = vmatprep.subr.mxu0 0.0
        %510 = vmatpush1.msra.mxu0 0.0
        %511 = vmatprep.subr.mxu0 0.0
        %512 = vmatpush1.msra.mxu0 0.0
        %513 = vmatprep.subr.mxu0 0.0
        %514 = vmatpush1.msra.mxu0 0.0
        %515 = vmatprep.subr.mxu0 0.0
        %516 = vmatpush1.msra.mxu0 0.0
        %517 = vmatprep.subr.mxu0 0.0
        %518 = vmatpush1.msra.mxu0 0.0
        %519 = vmatprep.subr.mxu0 0.0
        %520 = vmatpush1.msra.mxu0 0.0
        %521 = vmatprep.subr.mxu0 0.0
        %522 = vmatpush1.msra.mxu0 0.0
        %523 = vmatprep.subr.mxu0 0.0
        %524 = vmatpush1.msra.mxu0 0.0
        %525 = vmatprep.subr.mxu0 0.0
        %526 = vmatpush1.msra.mxu0 0.0
        %527 = vmatprep.subr.mxu0 0.0
        %528 = vmatpush1.msra.mxu0 0.0
        %529 = vmatprep.subr.mxu0 0.0
        %530 = vmatpush1.msra.mxu0 0.0
        %531 = vmatprep.subr.mxu0 0.0
        %532 = vmatpush1.msra.mxu0 0.0
        %533 = vmatprep.subr.mxu0 0.0
        %534 = vmatpush1.msra.mxu0 0.0
        %535 = vmatprep.subr.mxu0 0.0
        %536 = vmatpush1.msra.mxu0 0.0
        %537 = vmatprep.subr.mxu0 0.0
        %538 = vmatpush1.msra.mxu0 0.0
        %539 = vmatprep.subr.mxu0 0.0
        %540 = vmatpush1.msra.mxu0 0.0
        %541 = vmatprep.subr.mxu0 0.0
        %542 = vmatpush1.msra.mxu0 0.0
        %543 = vmatprep.subr.mxu0 0.0
        %544 = vmatpush1.msra.mxu0 0.0
        %545 = vmatprep.subr.mxu0 0.0
        %546 = vmatpush1.msra.mxu0 0.0
        %547 = vmatprep.subr.mxu0 0.0
        %548 = vmatpush1.msra.mxu0 0.0
        %549 = vmatprep.subr.mxu0 0.0
        %550 = vmatpush1.msra.mxu0 0.0
        %551 = vmatprep.subr.mxu0 0.0
        %552 = vmatpush1.msra.mxu0 0.0
        %553 = vmatprep.subr.mxu0 0.0
        %554 = vmatpush1.msra.mxu0 0.0
        %555 = vmatprep.subr.mxu0 0.0
        %556 = vmatpush1.msra.mxu0 0.0
        %557 = vmatprep.subr.mxu0 0.0
        %558 = vmatpush1.msra.mxu0 0.0
        %559 = vmatprep.subr.mxu0 0.0
        %560 = vmatpush1.msra.mxu0 0.0
        %561 = vmatprep.subr.mxu0 0.0
        %562 = vmatpush1.msra.mxu0 0.0
        %563 = vmatprep.subr.mxu0 0.0
        %564 = vmatpush1.msra.mxu0 0.0
        %565 = vmatprep.subr.mxu0 0.0
        %566 = vmatpush1.msra.mxu0 0.0
        %567 = vmatprep.subr.mxu0 0.0
        %568 = vmatpush1.msra.mxu0 0.0
        %569 = vmatprep.subr.mxu0 0.0
        %570 = vmatpush1.msra.mxu0 0.0
        %571 = vmatprep.mubr.f32.mxu0 0.0
        %572 = vmatmul.mubr.f32.gmra.mrb[0].mxu0 %v505
        %v573 = vpop.f32.mrb[0].mxu0
        %v574 = vadd.f32 0.0, %v573
        %v575 = vpop.f32.mrb[0].mxu0
        %576 = vdwg.mxu0
        %v577 = vrcp.pop 32.0
        %v578 = vmul.f32 %v574, %v577
        %v579 = vmul.f32 %v578, %v578
        %581 = vrot.lane.b32.xlu0 %v579, 1
        %v582 = vpop.permute.xlu0 %581
        %v584 = vsub.f32 %v578, %v582
        %v585 = vadd.f32 %v584, 1e-05
        %v586 = vrsqrt.pop %v585
        %v587 = vld [vmem:[%s3] sm:$0xff]
        %v588 = vsel %vm500, %v578, %v586
        %vm589 = vcmask 31744
        %v591 = vsel %vm589, %v587, 0
        %vm593 = vcmask 1043456
        %v595 = vsel %vm593, %v588, 0
        %597 = vmatprep.subr.mxu0 0.0
        %598 = vmatpush1.msra.mxu0 %v595
        %599 = vmatprep.subr.mxu0 0.0
        %600 = vmatpush1.msra.mxu0 0.0
        %601 = vmatprep.subr.mxu0 0.0
        %602 = vmatpush1.msra.mxu0 0.0
        %603 = vmatprep.subr.mxu0 0.0
        %604 = vmatpush1.msra.mxu0 0.0
        %605 = vmatprep.subr.mxu0 0.0
        %606 = vmatpush1.msra.mxu0 0.0
        %607 = vmatprep.subr.mxu0 0.0
        %608 = vmatpush1.msra.mxu0 0.0
        %609 = vmatprep.subr.mxu0 0.0
        %610 = vmatpush1.msra.mxu0 0.0
        %611 = vmatprep.subr.mxu0 0.0
        %612 = vmatpush1.msra.mxu0 0.0
        %613 = vmatprep.subr.mxu0 0.0
        %614 = vmatpush1.msra.mxu0 0.0
        %615 = vmatprep.subr.mxu0 0.0
        %616 = vmatpush1.msra.mxu0 0.0
        %617 = vmatprep.subr.mxu0 0.0
        %618 = vmatpush1.msra.mxu0 0.0
        %619 = vmatprep.subr.mxu0 0.0
        %620 = vmatpush1.msra.mxu0 0.0
        %621 = vmatprep.subr.mxu0 0.0
        %622 = vmatpush1.msra.mxu0 0.0
        %623 = vmatprep.subr.mxu0 0.0
        %624 = vmatpush1.msra.mxu0 0.0
        %625 = vmatprep.subr.mxu0 0.0
        %626 = vmatpush1.msra.mxu0 0.0
        %627 = vmatprep.subr.mxu0 0.0
        %628 = vmatpush1.msra.mxu0 0.0
        %629 = vmatprep.subr.mxu0 0.0
        %630 = vmatpush1.msra.mxu0 0.0
        %631 = vmatprep.subr.mxu0 0.0
        %632 = vmatpush1.msra.mxu0 0.0
        %633 = vmatprep.subr.mxu0 0.0
        %634 = vmatpush1.msra.mxu0 0.0
        %635 = vmatprep.subr.mxu0 0.0
        %636 = vmatpush1.msra.mxu0 0.0
        %637 = vmatprep.subr.mxu0 0.0
        %638 = vmatpush1.msra.mxu0 0.0
        %639 = vmatprep.subr.mxu0 0.0
        %640 = vmatpush1.msra.mxu0 0.0
        %641 = vmatprep.subr.mxu0 0.0
        %642 = vmatpush1.msra.mxu0 0.0
        %643 = vmatprep.subr.mxu0 0.0
        %644 = vmatpush1.msra.mxu0 0.0
        %645 = vmatprep.subr.mxu0 0.0
        %646 = vmatpush1.msra.mxu0 0.0
        %647 = vmatprep.subr.mxu0 0.0
        %648 = vmatpush1.msra.mxu0 0.0
        %649 = vmatprep.subr.mxu0 0.0
        %650 = vmatpush1.msra.mxu0 0.0
        %651 = vmatprep.subr.mxu0 0.0
        %652 = vmatpush1.msra.mxu0 0.0
        %653 = vmatprep.subr.mxu0 0.0
        %654 = vmatpush1.msra.mxu0 0.0
        %655 = vmatprep.subr.mxu0 0.0
        %656 = vmatpush1.msra.mxu0 0.0
        %657 = vmatprep.subr.mxu0 0.0
        %658 = vmatpush1.msra.mxu0 0.0
        %659 = vmatprep.subr.mxu0 0.0
        %660 = vmatpush1.msra.mxu0 0.0
        %661 = vmatprep.mubr.f32.mxu0 0.0
        %662 = vmatmul.mubr.f32.gmra.mrb[0].mxu0 %v591
        %v663 = vpop.f32.mrb[0].mxu0
        %v664 = vadd.f32 0.0, %v663
        %v665 = vpop.f32.mrb[0].mxu0
        %666 = vdwg.mxu0
        %668 = vset.pattern.permute.xlu0 0
        %669 = vperm.xlu0 %668, %v664
        %v670 = vpop.permute.xlu0 %669
        %v672 = vsub.f32 %v491, %v670
        %673 = vset.pattern.permute.xlu0 1
        %674 = vperm.xlu0 %673, %v664
        %v675 = vpop.permute.xlu0 %674
        %v677 = vmul.f32 %v672, %v675
        %v678 = vld [vmem:[%s1] sm:$0xff]
        %680 = vset.pattern.permute.xlu0 0
        %681 = vperm.xlu0 %680, %v678
        %v682 = vpop.permute.xlu0 %681
        %v684 = vmul.f32 %v677, %v682
        %v685 = vld [vmem:[%s2] sm:$0xff]
        %687 = vset.pattern.permute.xlu0 0
        %688 = vperm.xlu0 %687, %v685
        %v689 = vpop.permute.xlu0 %688
        %v691 = vadd.f32 %v684, %v689
        %v692 = vxor.u32 %v691, 2147483648
        %v693 = vmul.f32 %v692, 1.442695
        %v694 = vpow.pop %v693
        %v695 = vadd.f32 %v694, 1.0
        %v696 = vrcp.pop %v695
        %v697 = vmul.f32 1.0, %v696
        %v698 = vmul.f32 %v691, %v697
        %v699 = vlaneseq
        %v700 = vand.u32 %v699, 127
        %vm701 = vcmp.eq.s32.totalorder %v700, 0
        %vm702 = vcmask 1047680
        %703 = vrot.lane.b32.xlu0 %v698, 16
        %v704 = vpop.permute.xlu0 %703
        %v705 = vsel %vm702, %v704, %v698
        %706 = vrot.lane.b32.xlu0 %v705, 16
        %v707 = vpop.permute.xlu0 %706
        %v708 = vsel %vm702, %v707, %v698
        %v709 = vsel %vm701, 1, 0
        %vm710 = vcmp.eq.s32.totalorder %v709, 1
        %712 = vrot.lane.b32.xlu0 %v708, 113
        %v713 = vpop.permute.xlu0 %712
        %v715 = vsel %vm710, 0.0, %v713
        %v716 = vpack.c.bf16 %v715, %v715
        %vm717 = vcmp.eq.s32.totalorder %v700, 15
        %v718 = vsel %vm717, 1, 0
        %vm719 = vcmp.eq.s32.totalorder %v718, 1
        %720 = vrot.lane.b32.xlu0 %v708, 127
        %v721 = vpop.permute.xlu0 %720
        %v723 = vsel %vm719, 0.0, %v721
        %v724 = vpack.c.bf16 %v723, %v723
        %v725 = vpack.c.bf16 %v698, %v698
        %v726 = vld [vmem:[%s6] sm:$0xff]
        %v727 = vld [vmem:[%s6 + $0x8] sm:$0xff]
        %v728 = vld [vmem:[%s5] sm:$0xf]
        %v729 = vld [vmem:[%s5 + $0x4] sm:$0xf]
        %v732 = vunpack.c.l.b16 %v728
        %v733 = vunpack.c.l.b16 %v729
        %v734 = vpack.c.b16 %v733, %v732
        %v736 = vsel %vm503, %v734, 0
        %v739 = vsel %vm593, %v716, 0
        %741 = vmatprep.subr.bf16.mxu0 0
        %742 = vmatpush1.bf16.msra.mxu0 %v739
        %743 = vmatprep.subr.bf16.mxu0 0
        %744 = vmatpush1.bf16.msra.mxu0 0
        %745 = vmatprep.subr.bf16.mxu0 0
        %746 = vmatpush1.bf16.msra.mxu0 0
        %747 = vmatprep.subr.bf16.mxu0 0
        %748 = vmatpush1.bf16.msra.mxu0 0
        %749 = vmatprep.subr.bf16.mxu0 0
        %750 = vmatpush1.bf16.msra.mxu0 0
        %751 = vmatprep.subr.bf16.mxu0 0
        %752 = vmatpush1.bf16.msra.mxu0 0
        %753 = vmatprep.subr.bf16.mxu0 0
        %754 = vmatpush1.bf16.msra.mxu0 0
        %755 = vmatprep.subr.bf16.mxu0 0
        %756 = vmatpush1.bf16.msra.mxu0 0
        %757 = vmatprep.subr.bf16.mxu0 0
        %758 = vmatpush1.bf16.msra.mxu0 0
        %759 = vmatprep.subr.bf16.mxu0 0
        %760 = vmatpush1.bf16.msra.mxu0 0
        %761 = vmatprep.subr.bf16.mxu0 0
        %762 = vmatpush1.bf16.msra.mxu0 0
        %763 = vmatprep.subr.bf16.mxu0 0
        %764 = vmatpush1.bf16.msra.mxu0 0
        %765 = vmatprep.subr.bf16.mxu0 0
        %766 = vmatpush1.bf16.msra.mxu0 0
        %767 = vmatprep.subr.bf16.mxu0 0
        %768 = vmatpush1.bf16.msra.mxu0 0
        %769 = vmatprep.subr.bf16.mxu0 0
        %770 = vmatpush1.bf16.msra.mxu0 0
        %771 = vmatprep.subr.bf16.mxu0 0
        %772 = vmatpush1.bf16.msra.mxu0 0
        %773 = vmatprep.mubr.bf16.mxu0 0
        %774 = vmatmul.mubr.bf16.gmra.mrb[0].mxu0 %v736
        %v775 = vpop.f32.mrb[0].mxu0
        %v776 = vadd.f32 0.0, %v775
        %v777 = vpop.f32.mrb[0].mxu0
        %v778 = vpop.f32.mrb[0].mxu0
        %v779 = vadd.f32 0.0, %v778
        %v780 = vpop.f32.mrb[0].mxu0
        %781 = vdwg.mxu0
        %783 = vset.pattern.permute.xlu0 0
        %784 = vperm.xlu0 %783, %v726
        %v785 = vpop.permute.xlu0 %784
        %788 = vset.pattern.permute.xlu0 0
        %789 = vperm.xlu0 %788, %v727
        %v790 = vpop.permute.xlu0 %789
        %v792 = vadd.f32 %v785, %v776
        %v793 = vadd.f32 %v790, %v779
        %s794 = scalar_lea.vmem %s5, 8
        %v795 = vld [vmem:[%s794] sm:$0xf]
        %v796 = vld [vmem:[%s794 + $0x4] sm:$0xf]
        %v799 = vunpack.c.l.b16 %v795
        %v800 = vunpack.c.l.b16 %v796
        %v801 = vpack.c.b16 %v800, %v799
        %v803 = vsel %vm503, %v801, 0
        %v806 = vsel %vm593, %v725, 0
        %808 = vmatprep.subr.bf16.mxu0 0
        %809 = vmatpush1.bf16.msra.mxu0 %v806
        %810 = vmatprep.subr.bf16.mxu0 0
        %811 = vmatpush1.bf16.msra.mxu0 0
        %812 = vmatprep.subr.bf16.mxu0 0
        %813 = vmatpush1.bf16.msra.mxu0 0
        %814 = vmatprep.subr.bf16.mxu0 0
        %815 = vmatpush1.bf16.msra.mxu0 0
        %816 = vmatprep.subr.bf16.mxu0 0
        %817 = vmatpush1.bf16.msra.mxu0 0
        %818 = vmatprep.subr.bf16.mxu0 0
        %819 = vmatpush1.bf16.msra.mxu0 0
        %820 = vmatprep.subr.bf16.mxu0 0
        %821 = vmatpush1.bf16.msra.mxu0 0
        %822 = vmatprep.subr.bf16.mxu0 0
        %823 = vmatpush1.bf16.msra.mxu0 0
        %824 = vmatprep.subr.bf16.mxu0 0
        %825 = vmatpush1.bf16.msra.mxu0 0
        %826 = vmatprep.subr.bf16.mxu0 0
        %827 = vmatpush1.bf16.msra.mxu0 0
        %828 = vmatprep.subr.bf16.mxu0 0
        %829 = vmatpush1.bf16.msra.mxu0 0
        %830 = vmatprep.subr.bf16.mxu0 0
        %831 = vmatpush1.bf16.msra.mxu0 0
        %832 = vmatprep.subr.bf16.mxu0 0
        %833 = vmatpush1.bf16.msra.mxu0 0
        %834 = vmatprep.subr.bf16.mxu0 0
        %835 = vmatpush1.bf16.msra.mxu0 0
        %836 = vmatprep.subr.bf16.mxu0 0
        %837 = vmatpush1.bf16.msra.mxu0 0
        %838 = vmatprep.subr.bf16.mxu0 0
        %839 = vmatpush1.bf16.msra.mxu0 0
        %840 = vmatprep.mubr.bf16.mxu0 0
        %841 = vmatmul.mubr.bf16.gmra.mrb[0].mxu0 %v803
        %v842 = vpop.f32.mrb[0].mxu0
        %v843 = vadd.f32 0.0, %v842
        %v844 = vpop.f32.mrb[0].mxu0
        %v845 = vpop.f32.mrb[0].mxu0
        %v846 = vadd.f32 0.0, %v845
        %v847 = vpop.f32.mrb[0].mxu0
        %848 = vdwg.mxu0
        %v849 = vadd.f32 %v792, %v843
        %v850 = vadd.f32 %v793, %v846
        %s851 = scalar_lea.vmem %s5, 16
        %v852 = vld [vmem:[%s851] sm:$0xf]
        %v853 = vld [vmem:[%s851 + $0x4] sm:$0xf]
        %v856 = vunpack.c.l.b16 %v852
        %v857 = vunpack.c.l.b16 %v853
        %v858 = vpack.c.b16 %v857, %v856
        %v860 = vsel %vm503, %v858, 0
        %v863 = vsel %vm593, %v724, 0
        %865 = vmatprep.subr.bf16.mxu0 0
        %866 = vmatpush1.bf16.msra.mxu0 %v863
        %867 = vmatprep.subr.bf16.mxu0 0
        %868 = vmatpush1.bf16.msra.mxu0 0
        %869 = vmatprep.subr.bf16.mxu0 0
        %870 = vmatpush1.bf16.msra.mxu0 0
        %871 = vmatprep.subr.bf16.mxu0 0
        %872 = vmatpush1.bf16.msra.mxu0 0
        %873 = vmatprep.subr.bf16.mxu0 0
        %874 = vmatpush1.bf16.msra.mxu0 0
        %875 = vmatprep.subr.bf16.mxu0 0
        %876 = vmatpush1.bf16.msra.mxu0 0
        %877 = vmatprep.subr.bf16.mxu0 0
        %878 = vmatpush1.bf16.msra.mxu0 0
        %879 = vmatprep.subr.bf16.mxu0 0
        %880 = vmatpush1.bf16.msra.mxu0 0
        %881 = vmatprep.subr.bf16.mxu0 0
        %882 = vmatpush1.bf16.msra.mxu0 0
        %883 = vmatprep.subr.bf16.mxu0 0
        %884 = vmatpush1.bf16.msra.mxu0 0
        %885 = vmatprep.subr.bf16.mxu0 0
        %886 = vmatpush1.bf16.msra.mxu0 0
        %887 = vmatprep.subr.bf16.mxu0 0
        %888 = vmatpush1.bf16.msra.mxu0 0
        %889 = vmatprep.subr.bf16.mxu0 0
        %890 = vmatpush1.bf16.msra.mxu0 0
        %891 = vmatprep.subr.bf16.mxu0 0
        %892 = vmatpush1.bf16.msra.mxu0 0
        %893 = vmatprep.subr.bf16.mxu0 0
        %894 = vmatpush1.bf16.msra.mxu0 0
        %895 = vmatprep.subr.bf16.mxu0 0
        %896 = vmatpush1.bf16.msra.mxu0 0
        %897 = vmatprep.mubr.bf16.mxu0 0
        %898 = vmatmul.mubr.bf16.gmra.mrb[0].mxu0 %v860
        %v899 = vpop.f32.mrb[0].mxu0
        %v900 = vadd.f32 0.0, %v899
        %v901 = vpop.f32.mrb[0].mxu0
        %v902 = vpop.f32.mrb[0].mxu0
        %v903 = vadd.f32 0.0, %v902
        %v904 = vpop.f32.mrb[0].mxu0
        %905 = vdwg.mxu0
        %v906 = vadd.f32 %v849, %v900
        %v907 = vadd.f32 %v850, %v903
        %v908 = vsel %vm492, %v906, 0.0
        %909 = vadd.xlane.f32.xlu0 %v908
        %v910 = vpop.xlane.xlu0 %909
        %v911 = vsel %vm492, %v907, 0.0
        %912 = vadd.xlane.f32.xlu0 %v911
        %v913 = vpop.xlane.xlu0 %912
        %v914 = vmul.f32 %v906, %v906
        %v915 = vmul.f32 %v907, %v907
        %v916 = vsel %vm492, %v914, 0.0
        %917 = vadd.xlane.f32.xlu0 %v916
        %v918 = vpop.xlane.xlu0 %917
        %v919 = vsel %vm492, %v915, 0.0
        %920 = vadd.xlane.f32.xlu0 %v919
        %v921 = vpop.xlane.xlu0 %920
        %v922 = vsel %vm500, %v910, %v918
        %v923 = vsel %vm500, %v913, %v921
        %v924 = vld [vmem:[%s10] sm:$0xf]
        %v926 = vsel %vm492, %v924, 0
        %928 = vmatprep.subr.mxu0 0.0
        %929 = vmatpush1.msra.mxu0 %v922
        %930 = vmatprep.subr.mxu0 0.0
        %931 = vmatpush1.msra.mxu0 %v923
        %932 = vmatprep.subr.mxu0 0.0
        %933 = vmatpush1.msra.mxu0 0.0
        %934 = vmatprep.subr.mxu0 0.0
        %935 = vmatpush1.msra.mxu0 0.0
        %936 = vmatprep.subr.mxu0 0.0
        %937 = vmatpush1.msra.mxu0 0.0
        %938 = vmatprep.subr.mxu0 0.0
        %939 = vmatpush1.msra.mxu0 0.0
        %940 = vmatprep.subr.mxu0 0.0
        %941 = vmatpush1.msra.mxu0 0.0
        %942 = vmatprep.subr.mxu0 0.0
        %943 = vmatpush1.msra.mxu0 0.0
        %944 = vmatprep.subr.mxu0 0.0
        %945 = vmatpush1.msra.mxu0 0.0
        %946 = vmatprep.subr.mxu0 0.0
        %947 = vmatpush1.msra.mxu0 0.0
        %948 = vmatprep.subr.mxu0 0.0
        %949 = vmatpush1.msra.mxu0 0.0
        %950 = vmatprep.subr.mxu0 0.0
        %951 = vmatpush1.msra.mxu0 0.0
        %952 = vmatprep.subr.mxu0 0.0
        %953 = vmatpush1.msra.mxu0 0.0
        %954 = vmatprep.subr.mxu0 0.0
        %955 = vmatpush1.msra.mxu0 0.0
        %956 = vmatprep.subr.mxu0 0.0
        %957 = vmatpush1.msra.mxu0 0.0
        %958 = vmatprep.subr.mxu0 0.0
        %959 = vmatpush1.msra.mxu0 0.0
        %960 = vmatprep.subr.mxu0 0.0
        %961 = vmatpush1.msra.mxu0 0.0
        %962 = vmatprep.subr.mxu0 0.0
        %963 = vmatpush1.msra.mxu0 0.0
        %964 = vmatprep.subr.mxu0 0.0
        %965 = vmatpush1.msra.mxu0 0.0
        %966 = vmatprep.subr.mxu0 0.0
        %967 = vmatpush1.msra.mxu0 0.0
        %968 = vmatprep.subr.mxu0 0.0
        %969 = vmatpush1.msra.mxu0 0.0
        %970 = vmatprep.subr.mxu0 0.0
        %971 = vmatpush1.msra.mxu0 0.0
        %972 = vmatprep.subr.mxu0 0.0
        %973 = vmatpush1.msra.mxu0 0.0
        %974 = vmatprep.subr.mxu0 0.0
        %975 = vmatpush1.msra.mxu0 0.0
        %976 = vmatprep.subr.mxu0 0.0
        %977 = vmatpush1.msra.mxu0 0.0
        %978 = vmatprep.subr.mxu0 0.0
        %979 = vmatpush1.msra.mxu0 0.0
        %980 = vmatprep.subr.mxu0 0.0
        %981 = vmatpush1.msra.mxu0 0.0
        %982 = vmatprep.subr.mxu0 0.0
        %983 = vmatpush1.msra.mxu0 0.0
        %984 = vmatprep.subr.mxu0 0.0
        %985 = vmatpush1.msra.mxu0 0.0
        %986 = vmatprep.subr.mxu0 0.0
        %987 = vmatpush1.msra.mxu0 0.0
        %988 = vmatprep.subr.mxu0 0.0
        %989 = vmatpush1.msra.mxu0 0.0
        %990 = vmatprep.subr.mxu0 0.0
        %991 = vmatpush1.msra.mxu0 0.0
        %992 = vmatprep.mubr.f32.mxu0 0.0
        %993 = vmatmul.mubr.f32.gmra.mrb[0].mxu0 %v926
        %v994 = vpop.f32.mrb[0].mxu0
        %v995 = vadd.f32 0.0, %v994
        %v996 = vpop.f32.mrb[0].mxu0
        %997 = vdwg.mxu0
        %v998 = vrcp.pop 64.0
        %v999 = vmul.f32 %v995, %v998
        %v1000 = vmul.f32 %v999, %v999
        %1002 = vrot.lane.b32.xlu0 %v1000, 1
        %v1003 = vpop.permute.xlu0 %1002
        %v1005 = vsub.f32 %v999, %v1003
        %v1006 = vadd.f32 %v1005, 1e-05
        %v1007 = vrsqrt.pop %v1006
        %v1008 = vld [vmem:[%s9] sm:$0xff]
        %v1009 = vld [vmem:[%s9 + $0x8] sm:$0xff]
        %v1010 = vsel %vm500, %v999, %v1007
        %v1012 = vsel %vm589, %v1008, 0
        %v1015 = vsel %vm589, %v1009, 0
        %v1018 = vsel %vm593, %v1010, 0
        %1020 = vmatprep.subr.mxu0 0.0
        %1021 = vmatpush1.msra.mxu0 %v1018
        %1022 = vmatprep.subr.mxu0 0.0
        %1023 = vmatpush1.msra.mxu0 0.0
        %1024 = vmatprep.subr.mxu0 0.0
        %1025 = vmatpush1.msra.mxu0 0.0
        %1026 = vmatprep.subr.mxu0 0.0
        %1027 = vmatpush1.msra.mxu0 0.0
        %1028 = vmatprep.subr.mxu0 0.0
        %1029 = vmatpush1.msra.mxu0 0.0
        %1030 = vmatprep.subr.mxu0 0.0
        %1031 = vmatpush1.msra.mxu0 0.0
        %1032 = vmatprep.subr.mxu0 0.0
        %1033 = vmatpush1.msra.mxu0 0.0
        %1034 = vmatprep.subr.mxu0 0.0
        %1035 = vmatpush1.msra.mxu0 0.0
        %1036 = vmatprep.subr.mxu0 0.0
        %1037 = vmatpush1.msra.mxu0 0.0
        %1038 = vmatprep.subr.mxu0 0.0
        %1039 = vmatpush1.msra.mxu0 0.0
        %1040 = vmatprep.subr.mxu0 0.0
        %1041 = vmatpush1.msra.mxu0 0.0
        %1042 = vmatprep.subr.mxu0 0.0
        %1043 = vmatpush1.msra.mxu0 0.0
        %1044 = vmatprep.subr.mxu0 0.0
        %1045 = vmatpush1.msra.mxu0 0.0
        %1046 = vmatprep.subr.mxu0 0.0
        %1047 = vmatpush1.msra.mxu0 0.0
        %1048 = vmatprep.subr.mxu0 0.0
        %1049 = vmatpush1.msra.mxu0 0.0
        %1050 = vmatprep.subr.mxu0 0.0
        %1051 = vmatpush1.msra.mxu0 0.0
        %1052 = vmatprep.subr.mxu0 0.0
        %1053 = vmatpush1.msra.mxu0 0.0
        %1054 = vmatprep.subr.mxu0 0.0
        %1055 = vmatpush1.msra.mxu0 0.0
        %1056 = vmatprep.subr.mxu0 0.0
        %1057 = vmatpush1.msra.mxu0 0.0
        %1058 = vmatprep.subr.mxu0 0.0
        %1059 = vmatpush1.msra.mxu0 0.0
        %1060 = vmatprep.subr.mxu0 0.0
        %1061 = vmatpush1.msra.mxu0 0.0
        %1062 = vmatprep.subr.mxu0 0.0
        %1063 = vmatpush1.msra.mxu0 0.0
        %1064 = vmatprep.subr.mxu0 0.0
        %1065 = vmatpush1.msra.mxu0 0.0
        %1066 = vmatprep.subr.mxu0 0.0
        %1067 = vmatpush1.msra.mxu0 0.0
        %1068 = vmatprep.subr.mxu0 0.0
        %1069 = vmatpush1.msra.mxu0 0.0
        %1070 = vmatprep.subr.mxu0 0.0
        %1071 = vmatpush1.msra.mxu0 0.0
        %1072 = vmatprep.subr.mxu0 0.0
        %1073 = vmatpush1.msra.mxu0 0.0
        %1074 = vmatprep.subr.mxu0 0.0
        %1075 = vmatpush1.msra.mxu0 0.0
        %1076 = vmatprep.subr.mxu0 0.0
        %1077 = vmatpush1.msra.mxu0 0.0
        %1078 = vmatprep.subr.mxu0 0.0
        %1079 = vmatpush1.msra.mxu0 0.0
        %1080 = vmatprep.subr.mxu0 0.0
        %1081 = vmatpush1.msra.mxu0 0.0
        %1082 = vmatprep.subr.mxu0 0.0
        %1083 = vmatpush1.msra.mxu0 0.0
        %1084 = vmatprep.mubr.f32.mxu0 0.0
        %1085 = vmatmul.mubr.f32.gmra.mrb[0].mxu0 %v1012
        %v1086 = vpop.f32.mrb[0].mxu0
        %v1087 = vadd.f32 0.0, %v1086
        %v1088 = vpop.f32.mrb[0].mxu0
        %1089 = vmatprep.mubr.f32.mxu0 0.0
        %1090 = vmatmul.mubr.f32.gmra.mrb[0].mxu0 %v1015
        %v1091 = vpop.f32.mrb[0].mxu0
        %v1092 = vadd.f32 0.0, %v1091
        %v1093 = vpop.f32.mrb[0].mxu0
        %1094 = vdwg.mxu0
        %1096 = vset.pattern.permute.xlu0 0
        %1097 = vperm.xlu0 %1096, %v1087
        %v1098 = vpop.permute.xlu0 %1097
        %1101 = vset.pattern.permute.xlu0 0
        %1102 = vperm.xlu0 %1101, %v1092
        %v1103 = vpop.permute.xlu0 %1102
        %v1105 = vsub.f32 %v906, %v1098
        %v1106 = vsub.f32 %v907, %v1103
        %1107 = vset.pattern.permute.xlu0 1
        %1108 = vperm.xlu0 %1107, %v1087
        %v1109 = vpop.permute.xlu0 %1108
        %1111 = vset.pattern.permute.xlu0 1
        %1112 = vperm.xlu0 %1111, %v1092
        %v1113 = vpop.permute.xlu0 %1112
        %v1115 = vmul.f32 %v1105, %v1109
        %v1116 = vmul.f32 %v1106, %v1113
        %v1117 = vld [vmem:[%s7] sm:$0xff]
        %v1118 = vld [vmem:[%s7 + $0x8] sm:$0xff]
        %1120 = vset.pattern.permute.xlu0 0
        %1121 = vperm.xlu0 %1120, %v1117
        %v1122 = vpop.permute.xlu0 %1121
        %1125 = vset.pattern.permute.xlu0 0
        %1126 = vperm.xlu0 %1125, %v1118
        %v1127 = vpop.permute.xlu0 %1126
        %v1129 = vmul.f32 %v1115, %v1122
        %v1130 = vmul.f32 %v1116, %v1127
        %v1131 = vld [vmem:[%s8] sm:$0xff]
        %v1132 = vld [vmem:[%s8 + $0x8] sm:$0xff]
        %1134 = vset.pattern.permute.xlu0 0
        %1135 = vperm.xlu0 %1134, %v1131
        %v1136 = vpop.permute.xlu0 %1135
        %1139 = vset.pattern.permute.xlu0 0
        %1140 = vperm.xlu0 %1139, %v1132
        %v1141 = vpop.permute.xlu0 %1140
        %v1143 = vadd.f32 %v1129, %v1136
        %v1144 = vadd.f32 %v1130, %v1141
        %v1145 = vxor.u32 %v1143, 2147483648
        %v1146 = vxor.u32 %v1144, 2147483648
        %v1147 = vmul.f32 %v1145, 1.442695
        %v1148 = vpow.pop %v1147
        %v1149 = vmul.f32 %v1146, 1.442695
        %v1150 = vpow.pop %v1149
        %v1151 = vadd.f32 %v1148, 1.0
        %v1152 = vadd.f32 %v1150, 1.0
        %v1153 = vrcp.pop %v1151
        %v1154 = vmul.f32 1.0, %v1153
        %v1155 = vrcp.pop %v1152
        %v1156 = vmul.f32 1.0, %v1155
        %v1157 = vmul.f32 %v1143, %v1154
        %v1158 = vmul.f32 %v1144, %v1156
        %1159 = vrot.lane.b32.xlu0 %v1157, 16
        %v1160 = vpop.permute.xlu0 %1159
        %v1161 = vsel %vm702, %v1160, %v1157
        %1162 = vrot.lane.b32.xlu0 %v1158, 16
        %v1163 = vpop.permute.xlu0 %1162
        %v1164 = vsel %vm702, %v1163, %v1158
        %1165 = vrot.lane.b32.xlu0 %v1161, 16
        %v1166 = vpop.permute.xlu0 %1165
        %1167 = vrot.lane.b32.xlu0 %v1164, 16
        %v1168 = vpop.permute.xlu0 %1167
        %v1169 = vsel %vm702, %v1166, %v1157
        %v1170 = vsel %vm702, %v1168, %v1158
        %1173 = vrot.lane.b32.xlu0 %v1169, 113
        %v1174 = vpop.permute.xlu0 %1173
        %1175 = vrot.lane.b32.xlu0 %v1170, 113
        %v1176 = vpop.permute.xlu0 %1175
        %v1179 = vsel %vm710, 0.0, %v1174
        %v1180 = vsel %vm710, 0.0, %v1176
        %v1181 = vpack.c.bf16 %v1180, %v1179
        %1182 = vrot.lane.b32.xlu0 %v1169, 127
        %v1183 = vpop.permute.xlu0 %1182
        %1184 = vrot.lane.b32.xlu0 %v1170, 127
        %v1185 = vpop.permute.xlu0 %1184
        %v1188 = vsel %vm719, 0.0, %v1183
        %v1189 = vsel %vm719, 0.0, %v1185
        %v1190 = vpack.c.bf16 %v1189, %v1188
        %v1191 = vpack.c.bf16 %v1158, %v1157
        %v1192 = vld [vmem:[%s12] sm:$0xff]
        %v1193 = vld [vmem:[%s12 + $0x8] sm:$0xff]
        %v1194 = vld [vmem:[%s11] sm:$0xf]
        %v1195 = vld [vmem:[%s11 + $0x4] sm:$0xf]
        %v1198 = vunpack.c.l.b16 %v1194
        %v1199 = vunpack.c.l.b16 %v1195
        %v1200 = vpack.c.b16 %v1199, %v1198
        %v1202 = vsel %vm492, %v1200, 0
        %1204 = vmatprep.subr.bf16.mxu0 0
        %1205 = vmatpush1.bf16.msra.mxu0 %v1181
        %1206 = vmatprep.subr.bf16.mxu0 0
        %1207 = vmatpush1.bf16.msra.mxu0 0
        %1208 = vmatprep.subr.bf16.mxu0 0
        %1209 = vmatpush1.bf16.msra.mxu0 0
        %1210 = vmatprep.subr.bf16.mxu0 0
        %1211 = vmatpush1.bf16.msra.mxu0 0
        %1212 = vmatprep.subr.bf16.mxu0 0
        %1213 = vmatpush1.bf16.msra.mxu0 0
        %1214 = vmatprep.subr.bf16.mxu0 0
        %1215 = vmatpush1.bf16.msra.mxu0 0
        %1216 = vmatprep.subr.bf16.mxu0 0
        %1217 = vmatpush1.bf16.msra.mxu0 0
        %1218 = vmatprep.subr.bf16.mxu0 0
        %1219 = vmatpush1.bf16.msra.mxu0 0
        %1220 = vmatprep.subr.bf16.mxu0 0
        %1221 = vmatpush1.bf16.msra.mxu0 0
        %1222 = vmatprep.subr.bf16.mxu0 0
        %1223 = vmatpush1.bf16.msra.mxu0 0
        %1224 = vmatprep.subr.bf16.mxu0 0
        %1225 = vmatpush1.bf16.msra.mxu0 0
        %1226 = vmatprep.subr.bf16.mxu0 0
        %1227 = vmatpush1.bf16.msra.mxu0 0
        %1228 = vmatprep.subr.bf16.mxu0 0
        %1229 = vmatpush1.bf16.msra.mxu0 0
        %1230 = vmatprep.subr.bf16.mxu0 0
        %1231 = vmatpush1.bf16.msra.mxu0 0
        %1232 = vmatprep.subr.bf16.mxu0 0
        %1233 = vmatpush1.bf16.msra.mxu0 0
        %1234 = vmatprep.subr.bf16.mxu0 0
        %1235 = vmatpush1.bf16.msra.mxu0 0
        %1236 = vmatprep.mubr.bf16.mxu0 0
        %1237 = vmatmul.mubr.bf16.gmra.mrb[0].mxu0 %v1202
        %v1238 = vpop.f32.mrb[0].mxu0
        %v1239 = vadd.f32 0.0, %v1238
        %v1240 = vpop.f32.mrb[0].mxu0
        %v1241 = vpop.f32.mrb[0].mxu0
        %v1242 = vadd.f32 0.0, %v1241
        %v1243 = vpop.f32.mrb[0].mxu0
        %1244 = vdwg.mxu0
        %1246 = vset.pattern.permute.xlu0 0
        %1247 = vperm.xlu0 %1246, %v1192
        %v1248 = vpop.permute.xlu0 %1247
        %1251 = vset.pattern.permute.xlu0 0
        %1252 = vperm.xlu0 %1251, %v1193
        %v1253 = vpop.permute.xlu0 %1252
        %v1255 = vadd.f32 %v1248, %v1239
        %v1256 = vadd.f32 %v1253, %v1242
        %s1257 = scalar_lea.vmem %s11, 8
        %v1258 = vld [vmem:[%s1257] sm:$0xf]
        %v1259 = vld [vmem:[%s1257 + $0x4] sm:$0xf]
        %v1262 = vunpack.c.l.b16 %v1258
        %v1263 = vunpack.c.l.b16 %v1259
        %v1264 = vpack.c.b16 %v1263, %v1262
        %v1266 = vsel %vm492, %v1264, 0
        %1268 = vmatprep.subr.bf16.mxu0 0
        %1269 = vmatpush1.bf16.msra.mxu0 %v1191
        %1270 = vmatprep.subr.bf16.mxu0 0
        %1271 = vmatpush1.bf16.msra.mxu0 0
        %1272 = vmatprep.subr.bf16.mxu0 0
        %1273 = vmatpush1.bf16.msra.mxu0 0
        %1274 = vmatprep.subr.bf16.mxu0 0
        %1275 = vmatpush1.bf16.msra.mxu0 0
        %1276 = vmatprep.subr.bf16.mxu0 0
        %1277 = vmatpush1.bf16.msra.mxu0 0
        %1278 = vmatprep.subr.bf16.mxu0 0
        %1279 = vmatpush1.bf16.msra.mxu0 0
        %1280 = vmatprep.subr.bf16.mxu0 0
        %1281 = vmatpush1.bf16.msra.mxu0 0
        %1282 = vmatprep.subr.bf16.mxu0 0
        %1283 = vmatpush1.bf16.msra.mxu0 0
        %1284 = vmatprep.subr.bf16.mxu0 0
        %1285 = vmatpush1.bf16.msra.mxu0 0
        %1286 = vmatprep.subr.bf16.mxu0 0
        %1287 = vmatpush1.bf16.msra.mxu0 0
        %1288 = vmatprep.subr.bf16.mxu0 0
        %1289 = vmatpush1.bf16.msra.mxu0 0
        %1290 = vmatprep.subr.bf16.mxu0 0
        %1291 = vmatpush1.bf16.msra.mxu0 0
        %1292 = vmatprep.subr.bf16.mxu0 0
        %1293 = vmatpush1.bf16.msra.mxu0 0
        %1294 = vmatprep.subr.bf16.mxu0 0
        %1295 = vmatpush1.bf16.msra.mxu0 0
        %1296 = vmatprep.subr.bf16.mxu0 0
        %1297 = vmatpush1.bf16.msra.mxu0 0
        %1298 = vmatprep.subr.bf16.mxu0 0
        %1299 = vmatpush1.bf16.msra.mxu0 0
        %1300 = vmatprep.mubr.bf16.mxu0 0
        %1301 = vmatmul.mubr.bf16.gmra.mrb[0].mxu0 %v1266
        %v1302 = vpop.f32.mrb[0].mxu0
        %v1303 = vadd.f32 0.0, %v1302
        %v1304 = vpop.f32.mrb[0].mxu0
        %v1305 = vpop.f32.mrb[0].mxu0
        %v1306 = vadd.f32 0.0, %v1305
        %v1307 = vpop.f32.mrb[0].mxu0
        %1308 = vdwg.mxu0
        %v1309 = vadd.f32 %v1255, %v1303
        %v1310 = vadd.f32 %v1256, %v1306
        %s1311 = scalar_lea.vmem %s11, 16
        %v1312 = vld [vmem:[%s1311] sm:$0xf]
        %v1313 = vld [vmem:[%s1311 + $0x4] sm:$0xf]
        %v1316 = vunpack.c.l.b16 %v1312
        %v1317 = vunpack.c.l.b16 %v1313
        %v1318 = vpack.c.b16 %v1317, %v1316
        %v1320 = vsel %vm492, %v1318, 0
        %1322 = vmatprep.subr.bf16.mxu0 0
        %1323 = vmatpush1.bf16.msra.mxu0 %v1190
        %1324 = vmatprep.subr.bf16.mxu0 0
        %1325 = vmatpush1.bf16.msra.mxu0 0
        %1326 = vmatprep.subr.bf16.mxu0 0
        %1327 = vmatpush1.bf16.msra.mxu0 0
        %1328 = vmatprep.subr.bf16.mxu0 0
        %1329 = vmatpush1.bf16.msra.mxu0 0
        %1330 = vmatprep.subr.bf16.mxu0 0
        %1331 = vmatpush1.bf16.msra.mxu0 0
        %1332 = vmatprep.subr.bf16.mxu0 0
        %1333 = vmatpush1.bf16.msra.mxu0 0
        %1334 = vmatprep.subr.bf16.mxu0 0
        %1335 = vmatpush1.bf16.msra.mxu0 0
        %1336 = vmatprep.subr.bf16.mxu0 0
        %1337 = vmatpush1.bf16.msra.mxu0 0
        %1338 = vmatprep.subr.bf16.mxu0 0
        %1339 = vmatpush1.bf16.msra.mxu0 0
        %1340 = vmatprep.subr.bf16.mxu0 0
        %1341 = vmatpush1.bf16.msra.mxu0 0
        %1342 = vmatprep.subr.bf16.mxu0 0
        %1343 = vmatpush1.bf16.msra.mxu0 0
        %1344 = vmatprep.subr.bf16.mxu0 0
        %1345 = vmatpush1.bf16.msra.mxu0 0
        %1346 = vmatprep.subr.bf16.mxu0 0
        %1347 = vmatpush1.bf16.msra.mxu0 0
        %1348 = vmatprep.subr.bf16.mxu0 0
        %1349 = vmatpush1.bf16.msra.mxu0 0
        %1350 = vmatprep.subr.bf16.mxu0 0
        %1351 = vmatpush1.bf16.msra.mxu0 0
        %1352 = vmatprep.subr.bf16.mxu0 0
        %1353 = vmatpush1.bf16.msra.mxu0 0
        %1354 = vmatprep.mubr.bf16.mxu0 0
        %1355 = vmatmul.mubr.bf16.gmra.mrb[0].mxu0 %v1320
        %v1356 = vpop.f32.mrb[0].mxu0
        %v1357 = vadd.f32 0.0, %v1356
        %v1358 = vpop.f32.mrb[0].mxu0
        %v1359 = vpop.f32.mrb[0].mxu0
        %v1360 = vadd.f32 0.0, %v1359
        %v1361 = vpop.f32.mrb[0].mxu0
        %1362 = vdwg.mxu0
        %v1363 = vadd.f32 %v1309, %v1357
        %v1364 = vadd.f32 %v1310, %v1360
        %v1365 = vld [vmem:[%s13] sm:$0xf]
        %v1366 = vld [vmem:[%s13 + $0x4] sm:$0xf]
        %v1367 = vpack.c.bf16 %v491, %v491
        %v1368 = vld [vmem:[%s14] sm:$0xff]
        %v1369 = vld [vmem:[%s14 + $0x8] sm:$0xff]
        %1371 = vset.pattern.permute.xlu0 0
        %1372 = vperm.xlu0 %1371, %v1368
        %v1373 = vpop.permute.xlu0 %1372
        %1376 = vset.pattern.permute.xlu0 0
        %1377 = vperm.xlu0 %1376, %v1369
        %v1378 = vpop.permute.xlu0 %1377
        %v1382 = vunpack.c.l.b16 %v1365
        %v1383 = vunpack.c.l.b16 %v1366
        %v1384 = vpack.c.b16 %v1383, %v1382
        %v1386 = vsel %vm503, %v1384, 0
        %v1389 = vsel %vm593, %v1367, 0
        %1391 = vmatprep.subr.bf16.mxu0 0
        %1392 = vmatpush1.bf16.msra.mxu0 %v1389
        %1393 = vmatprep.subr.bf16.mxu0 0
        %1394 = vmatpush1.bf16.msra.mxu0 0
        %1395 = vmatprep.subr.bf16.mxu0 0
        %1396 = vmatpush1.bf16.msra.mxu0 0
        %1397 = vmatprep.subr.bf16.mxu0 0
        %1398 = vmatpush1.bf16.msra.mxu0 0
        %1399 = vmatprep.subr.bf16.mxu0 0
        %1400 = vmatpush1.bf16.msra.mxu0 0
        %1401 = vmatprep.subr.bf16.mxu0 0
        %1402 = vmatpush1.bf16.msra.mxu0 0
        %1403 = vmatprep.subr.bf16.mxu0 0
        %1404 = vmatpush1.bf16.msra.mxu0 0
        %1405 = vmatprep.subr.bf16.mxu0 0
        %1406 = vmatpush1.bf16.msra.mxu0 0
        %1407 = vmatprep.subr.bf16.mxu0 0
        %1408 = vmatpush1.bf16.msra.mxu0 0
        %1409 = vmatprep.subr.bf16.mxu0 0
        %1410 = vmatpush1.bf16.msra.mxu0 0
        %1411 = vmatprep.subr.bf16.mxu0 0
        %1412 = vmatpush1.bf16.msra.mxu0 0
        %1413 = vmatprep.subr.bf16.mxu0 0
        %1414 = vmatpush1.bf16.msra.mxu0 0
        %1415 = vmatprep.subr.bf16.mxu0 0
        %1416 = vmatpush1.bf16.msra.mxu0 0
        %1417 = vmatprep.subr.bf16.mxu0 0
        %1418 = vmatpush1.bf16.msra.mxu0 0
        %1419 = vmatprep.subr.bf16.mxu0 0
        %1420 = vmatpush1.bf16.msra.mxu0 0
        %1421 = vmatprep.subr.bf16.mxu0 0
        %1422 = vmatpush1.bf16.msra.mxu0 0
        %1423 = vmatprep.mubr.bf16.mxu0 0
        %1424 = vmatmul.mubr.bf16.gmra.mrb[0].mxu0 %v1386
        %v1425 = vpop.f32.mrb[0].mxu0
        %v1426 = vadd.f32 %v1373, %v1425
        %v1427 = vpop.f32.mrb[0].mxu0
        %v1428 = vpop.f32.mrb[0].mxu0
        %v1429 = vadd.f32 %v1378, %v1428
        %v1430 = vpop.f32.mrb[0].mxu0
        %1431 = vdwg.mxu0
        %v1432 = vadd.f32 %v1363, %v1426
        %v1433 = vadd.f32 %v1364, %v1429
        %v1434 = vmul.f32 %v1432, 0.70710677
        %v1435 = vmul.f32 %v1433, 0.70710677
        %1436 = vst.msk [vmem:[%s485] sm:$0xff] %vm492, %v1434
        %1437 = vst.msk [vmem:[%s485 + $0x8] sm:$0xff] %vm492, %v1435
        %s1438 = sand.u32 %s357, 1
        %s1439 = scalar_lea.sflag [#allocation3], %s1438
        %s1440 = sand.u32 %s357, 1
        %s1441 = smul.addr %s1440, 16
        %s1442 = scalar_lea.vmem [#allocation2], %s1441
        // Predicated region
        $region81: #{tpu_custom_call.1} parent=79 // pred_check
          %p1443 = pneg %p367
        $region82: #{tpu_custom_call.1} parent=79 // pred_check_branch
          %1445 = sbr.rel (%p1443) target = $region84
        $region83: #{tpu_custom_call.1} parent=79 // pred_region
          %s1447 = ssub.s32 256, 256
          %1448 = vsyncadd %s1439, %s1447
          %s1449 = smul.addr %s29, 2
          %s1450 = smul.addr %s1449, 128
          %s1451 = scalar_lea.hbm %s15, %s1450
          %s1452 = sshll.u32 %s1442, 4
          %s1453 = int_to_ptr.vmem [resolvable:$true] %s1452
          %1458 = dma.vmem_to_hbm [thread:$0]  %s1453, 256, %s1451, %s1439, 128, 128, 8
        $region84: #{tpu_custom_call.1} parent=79 // pred_fallthru
          _
      $region80: #{tpu_custom_call.1} parent=5 // pred_fallthru
        _
      %p1459 = scmp.le.s32.totalorder 2, %s24
      // Predicated region
      $region85: #{tpu_custom_call.1} parent=5 // pred_check
        %p1460 = pneg %p1459
      $region86: #{tpu_custom_call.1} parent=5 // pred_check_branch
        %1462 = sbr.rel (%p1460) target = $region88
      $region87: #{tpu_custom_call.1} parent=5 // pred_region
        %s1463 = ssub.s32 %s24, 2
        // Predicated region
        $region89: #{tpu_custom_call.1} parent=87 // pred_check
          %p1464 = pneg %p373
        $region90: #{tpu_custom_call.1} parent=87 // pred_check_branch
          %1466 = sbr.rel (%p1464) target = $region92
        $region91: #{tpu_custom_call.1} parent=87 // pred_region
          %s1467 = sand.u32 %s358, 1
          %s1468 = scalar_lea.sflag [#allocation3], %s1467
          %s1469 = sand.u32 %s358, 1
          %s1470 = smul.addr %s1469, 16
          %s1471 = scalar_lea.vmem [#allocation2], %s1470
          %1472 = dma.done %s1468, 256
        $region92: #{tpu_custom_call.1} parent=87 // pred_fallthru
          _
      $region88: #{tpu_custom_call.1} parent=5 // pred_fallthru
        _
    $region6: #{tpu_custom_call.1} parent=1 // loop_footer
      %s28 = sadd.s32 1, %s24
    $region7: #{tpu_custom_call.1} parent=1 // loop_footer_branch
      %23 = sbr.rel target = $region3
    $region8: #{tpu_custom_call.1} parent=1 // loop_exit
      _
    %1473 = vsyncpa [#allocation3], 1
    %s1474 = scalar_lea.sflag [#allocation3], 1
    %1475 = vsyncpa %s1474, 1

</llo_original>
